<compile_context>
chip_gen: v7x
topology: tpu7x:2x2x1
jax: 0.10.0
libtpu: 0.0.40
codegen_flags: <defaults>
</compile_context>

<pallas_src>
import numpy as np
import jax
import jax.numpy as jnp
from jax.experimental import pallas as pl
from jax.experimental.pallas import tpu as pltpu

MU = 0.2
THETA = 1.0
STEPS = 4

# scipy.special.iv(k, 1.0) hardcoded for theta = 1.0 (no scipy dependency).
_IV = (1.2660658777520084, 0.5651591039924851,
       0.1357476697670383, 0.022168424924331902)
# ivs[1:] = [(-1)**i * 2 * iv for i, iv in enumerate(ivs[1:])]
_C0 = _IV[0]
_C1 = 2.0 * _IV[1]
_C2 = -2.0 * _IV[2]
_C3 = 2.0 * _IV[3]

# l_x = -0.5*(A@A) + (1-mu)*A + _LX_DIAG*I
_LX_DIAG = 0.5 * (1.0 - (1.0 - MU) ** 2)

_VMEM_LIMIT_BYTES = 32 * 1024 * 1024    # scoped-VMEM budget, safe on v5e..v7x
_VMEM_BUDGET_BYTES = 24 * 1024 * 1024   # headroom for compiler-internal scratch

_COMPILER_PARAMS = pltpu.CompilerParams(
    dimension_semantics=("parallel", "parallel", "arbitrary"),
    vmem_limit_bytes=_VMEM_LIMIT_BYTES,
)


def _local_eye(shape):
    """f32 identity tile (used only inside pl.when(i == j) epilogues)."""
    rows = jax.lax.broadcasted_iota(jnp.int32, shape, 0)
    cols = jax.lax.broadcasted_iota(jnp.int32, shape, 1)
    return (rows == cols).astype(jnp.float32)


# --------------------------------------------------------------------------
# Kernels: accumulate dot(A_blk, B_blk) into an f32 VMEM scratch over the
# k grid axis, apply the elementwise epilogue and cast at the last k step.
# --------------------------------------------------------------------------

def _lx_kernel(adj_a_ref, adj_b_ref, adj_ij_ref, out_ref, acc_ref):
    """l_x = -0.5*(A@A) + (1-mu)*A + _LX_DIAG*I (bf16 out, f32 accumulation)."""
    i, j, k = pl.program_id(0), pl.program_id(1), pl.program_id(2)
    last = pl.num_programs(2) - 1

    @pl.when(k == 0)
    def _():
        acc_ref[...] = jnp.zeros_like(acc_ref)

    acc_ref[...] += jnp.dot(adj_a_ref[...], adj_b_ref[...],
                            preferred_element_type=jnp.float32)

    @pl.when(k == last)
    def _():
        acc_ref[...] = (-0.5 * acc_ref[...]
                        + (1.0 - MU) * adj_ij_ref[...].astype(jnp.float32))

    @pl.when((k == last) & (i == j))
    def _():
        acc_ref[...] += _LX_DIAG * _local_eye(acc_ref.shape)

    @pl.when(k == last)
    def _():
        out_ref[...] = acc_ref[...].astype(out_ref.dtype)


def _t2_kernel(lx_a_ref, lx_b_ref, out_ref, acc_ref):
    """T2 = 2 * l_x @ l_x - I (bf16 out, f32 accumulation)."""
    i, j, k = pl.program_id(0), pl.program_id(1), pl.program_id(2)
    last = pl.num_programs(2) - 1

    @pl.when(k == 0)
    def _():
        acc_ref[...] = jnp.zeros_like(acc_ref)

    acc_ref[...] += jnp.dot(lx_a_ref[...], lx_b_ref[...],
                            preferred_element_type=jnp.float32)

    @pl.when(k == last)
    def _():
        acc_ref[...] = 2.0 * acc_ref[...]

    @pl.when((k == last) & (i == j))
    def _():
        acc_ref[...] -= _local_eye(acc_ref.shape)

    @pl.when(k == last)
    def _():
        out_ref[...] = acc_ref[...].astype(out_ref.dtype)


def _res_kernel(lx_a_ref, t2_b_ref, lx_ij_ref, t2_ij_ref, out_ref, acc_ref):
    """res = c0*I + c1*l_x + c2*T2 + c3*(2*l_x@T2 - l_x)
           = 2*c3*(l_x@T2) + (c1-c3)*l_x + c2*T2 + c0*I   (f32 out)."""
    i, j, k = pl.program_id(0), pl.program_id(1), pl.program_id(2)
    last = pl.num_programs(2) - 1

    @pl.when(k == 0)
    def _():
        acc_ref[...] = jnp.zeros_like(acc_ref)

    acc_ref[...] += jnp.dot(lx_a_ref[...], t2_b_ref[...],
                            preferred_element_type=jnp.float32)

    @pl.when(k == last)
    def _():
        acc_ref[...] = ((2.0 * _C3) * acc_ref[...]
                        + (_C1 - _C3) * lx_ij_ref[...].astype(jnp.float32)
                        + _C2 * t2_ij_ref[...].astype(jnp.float32))

    @pl.when((k == last) & (i == j))
    def _():
        acc_ref[...] += _C0 * _local_eye(acc_ref.shape)

    @pl.when(k == last)
    def _():
        out_ref[...] = acc_ref[...].astype(out_ref.dtype)


# --------------------------------------------------------------------------
# Grid specs / tiling
# --------------------------------------------------------------------------

def _grid_spec(np_pad, tile, kblock, n_ij_inputs):
    """Output-stationary matmul grid; extra inputs read at output block (i,j)."""
    nb = np_pad // tile
    nk = np_pad // kblock
    a_spec = pl.BlockSpec((tile, kblock), lambda i, j, k: (i, k))
    b_spec = pl.BlockSpec((kblock, tile), lambda i, j, k: (k, j))
    ij_spec = pl.BlockSpec((tile, tile), lambda i, j, k: (i, j))
    return pltpu.PrefetchScalarGridSpec(
        num_scalar_prefetch=0,
        grid=(nb, nb, nk),
        in_specs=[a_spec, b_spec] + [ij_spec] * n_ij_inputs,
        out_specs=pl.BlockSpec((tile, tile), lambda i, j, k: (i, j)),
        scratch_shapes=[pltpu.VMEM((tile, tile), jnp.float32)],
    )


def _cost_estimate(np_pad, tile, kblock, n_ij_inputs, out_bytes):
    nb = np_pad // tile
    nk = np_pad // kblock
    a_bytes = np_pad * np_pad * 2 * (nb if nk > 1 else 1)  # panel mode reads A once
    b_bytes = np_pad * np_pad * 2 * nb
    ij_bytes = n_ij_inputs * np_pad * np_pad * 2
    o_bytes = np_pad * np_pad * out_bytes
    return pl.CostEstimate(flops=int(2 * np_pad ** 3), transcendentals=0,
                           bytes_accessed=int(a_bytes + b_bytes + ij_bytes + o_bytes))


def _res_kernel_vmem_bytes(tile, kblock):
    """VMEM estimate for the widest kernel (_res): bf16 ins (x2 buffers),
    f32 out (x2 buffers), f32 accumulator scratch."""
    in_b = 2 * (tile * kblock + kblock * tile + 2 * tile * tile) * 2
    out_b = 2 * tile * tile * 4
    acc_b = tile * tile * 4
    return in_b + out_b + acc_b


def _pick_tiling(n):
    tile = 128 if n <= 128 else 256
    np_pad = ((n + tile - 1) // tile) * tile
    # 512 fills the 256-wide MXU and keeps >=2x2 parallel output blocks (v7x).
    if np_pad >= 1024 and np_pad % 512 == 0:
        tile = 512
    # Full-K residency when it fits the VMEM budget (A row-panel stays resident
    # across the j sweep -> ~halves HBM reads); else classic 3-D grid.
    if _res_kernel_vmem_bytes(tile, np_pad) <= _VMEM_BUDGET_BYTES:
        kblock = np_pad
    else:
        kblock = tile
    return tile, np_pad, kblock


# --------------------------------------------------------------------------
# Forward
# --------------------------------------------------------------------------

def gaussian_forward(x, edge_index, edge_attr):
    """Dense-result equivalent of Gaussian.forward; returns the (N, N) matrix."""
    N = x.shape[0]
    row = edge_index[0].astype(jnp.int32)
    col = edge_index[1].astype(jnp.int32)
    edge_attr = edge_attr.astype(jnp.float32)

    tile, np_pad, kblock = _pick_tiling(N)

    # get_degrees: #edges per source node; guarded pow(-1) (0 -> 0).
    deg = jax.ops.segment_sum(jnp.ones_like(edge_attr), row, num_segments=N)
    deg_inv = jnp.where(deg > 0, 1.0 / deg, 0.0)

    # Normalized adjacency built directly at padded size (duplicates summed,
    # matching sparse_coo_tensor coalescing).  Zero padding keeps every operand
    # block-diagonal, so the top-left NxN block of the result is exact.
    # TODO(synk): the data-dependent COO scatter-add has no clean static-BlockSpec
    # Pallas equivalent (would need sorted edges + scalar prefetch); kept in XLA.
    adj = jnp.zeros((np_pad, np_pad), jnp.float32).at[row, col].add(
        deg_inv[row] * edge_attr)
    # bf16 operands, f32 MXU accumulation: ~3x MXU rate + half the HBM re-reads.
    adj_bf16 = adj.astype(jnp.bfloat16)

    bf16_out = jax.ShapeDtypeStruct((np_pad, np_pad), jnp.bfloat16)
    f32_out = jax.ShapeDtypeStruct((np_pad, np_pad), jnp.float32)

    lx = pl.pallas_call(
        _lx_kernel, out_shape=bf16_out,
        grid_spec=_grid_spec(np_pad, tile, kblock, n_ij_inputs=1),
        compiler_params=_COMPILER_PARAMS,
        cost_estimate=_cost_estimate(np_pad, tile, kblock, 1, 2),
    )(adj_bf16, adj_bf16, adj_bf16)

    t2 = pl.pallas_call(
        _t2_kernel, out_shape=bf16_out,
        grid_spec=_grid_spec(np_pad, tile, kblock, n_ij_inputs=0),
        compiler_params=_COMPILER_PARAMS,
        cost_estimate=_cost_estimate(np_pad, tile, kblock, 0, 2),
    )(lx, lx)

    res = pl.pallas_call(
        _res_kernel, out_shape=f32_out,
        grid_spec=_grid_spec(np_pad, tile, kblock, n_ij_inputs=2),
        compiler_params=_COMPILER_PARAMS,
        cost_estimate=_cost_estimate(np_pad, tile, kblock, 2, 4),
    )(lx, t2, lx, t2)

    return res[:N, :N]


if __name__ == "__main__":
    key = jax.random.PRNGKey(0)
    # N deliberately NOT a multiple of the 256 tile -> exercises padding path;
    # padded size 512 gives a (2,2,.) grid, exercising accumulation/epilogue
    # and giving >= 2 parallel output blocks (megacore-friendly).
    N, F_in, E = 500, 16, 2048
    k1, k2, k3, k4 = jax.random.split(key, 4)

    x = jax.random.normal(k1, (N, F_in), dtype=jnp.float32)
    row = jax.random.randint(k2, (E,), 0, N)
    col = jax.random.randint(k3, (E,), 0, N)
    # add self-loops so every node has out-degree >= 1 (matches torch pow(-1))
    loops = jnp.arange(N)
    row = jnp.concatenate([row, loops]).astype(jnp.int32)
    col = jnp.concatenate([col, loops]).astype(jnp.int32)
    edge_index = jnp.stack([row, col])
    edge_attr = jax.random.uniform(k4, (row.shape[0],), jnp.float32, 0.1, 1.0)

    dense_res = jax.block_until_ready(gaussian_forward(x, edge_index, edge_attr))
    dense_np = np.asarray(dense_res)

    # ---- float64 host reference (same math, dense) ----
    row_np, col_np = np.asarray(row), np.asarray(col)
    ea_np = np.asarray(edge_attr, dtype=np.float64)
    deg_np = np.zeros(N, np.float64)
    np.add.at(deg_np, row_np, 1.0)
    deg_inv_np = np.zeros_like(deg_np)
    deg_inv_np[deg_np > 0] = 1.0 / deg_np[deg_np > 0]
    A = np.zeros((N, N), np.float64)
    np.add.at(A, (row_np, col_np), deg_inv_np[row_np] * ea_np)
    I = np.eye(N)
    t1 = (1.0 - MU) * I - A
    lx_ref = -0.5 * (t1 @ t1 - I)
    T2_ref = 2.0 * lx_ref @ lx_ref - I
    T3_ref = 2.0 * lx_ref @ T2_ref - lx_ref
    ref = _C0 * I + _C1 * lx_ref + _C2 * T2_ref + _C3 * T3_ref

    assert np.all(np.isfinite(dense_np))
    # Tolerance accommodates bf16 matmul operands (f32 accumulation) across the
    # three chained matmuls; structural errors are orders of magnitude larger.
    assert np.allclose(dense_np, ref, rtol=1e-2, atol=1e-2), \
        float(np.abs(dense_np - ref).max())

    # Return format like torch sparse: (indices, values) of nonzero entries.
    # TODO(synk): torch's COO result also stores explicit zeros created by
    # sparse adds/conversions; we report the mathematically nonzero entries.
    nz = np.nonzero(dense_np)
    indices = np.stack(nz)          # (2, nnz)
    values = dense_np[nz]           # (nnz,)
    assert indices.shape[0] == 2 and values.shape[0] == indices.shape[1]
    print("KERNEL_OK")
</pallas_src>

<mosaic_0001>
module attributes {stable_mosaic.version = 11 : i64} {
  func.func @_lx_kernel(%arg0: i32, %arg1: i32, %arg2: i32, %arg3: memref<256x512xbf16, #tpu.memory_space<vmem>>, %arg4: memref<512x256xbf16, #tpu.memory_space<vmem>>, %arg5: memref<256x256xbf16, #tpu.memory_space<vmem>>, %arg6: memref<256x256xbf16, #tpu.memory_space<vmem>>, %arg7: memref<256x256xf32, #tpu.memory_space<vmem>>) attributes {dimension_semantics = [#tpu.dimension_semantics<parallel>, #tpu.dimension_semantics<parallel>, #tpu.dimension_semantics<arbitrary>], iteration_bounds = array<i64: 2, 2, 1>, scalar_prefetch = 0 : i64, scratch_operands = 1 : i64, tpu.core_type = #tpu.core_type<tc>, window_params = [{transform_indices = @transform_0, window_bounds = array<i64: 256, 512>}, {transform_indices = @transform_1, window_bounds = array<i64: 512, 256>}, {transform_indices = @transform_2, window_bounds = array<i64: 256, 256>}, {transform_indices = @transform_3, window_bounds = array<i64: 256, 256>}]} {
    %c0_i32 = arith.constant 0 : i32
    %0 = arith.cmpi eq, %arg2, %c0_i32 : i32
    %1 = arith.extui %0 : i1 to i32
    %c0_i32_0 = arith.constant 0 : i32
    %2 = arith.cmpi ne, %1, %c0_i32_0 : i32
    scf.if %2 {
      %cst_14 = arith.constant 0.000000e+00 : f32
      %20 = vector.broadcast %cst_14 : f32 to vector<256x256xf32>
      %c0_15 = arith.constant 0 : index
      %c0_16 = arith.constant 0 : index
      %21 = vector.load %arg7[%c0_15, %c0_16] : memref<256x256xf32, #tpu.memory_space<vmem>>, vector<256x256xf32>
      tpu.vector_store %arg7[%c0_15, %c0_16], %20 {strides = array<i32>} : memref<256x256xf32, #tpu.memory_space<vmem>>, vector<256x256xf32>,
    } else {
    }
    %c0 = arith.constant 0 : index
    %c0_1 = arith.constant 0 : index
    %3 = vector.load %arg7[%c0, %c0_1] : memref<256x256xf32, #tpu.memory_space<vmem>>, vector<256x256xf32>
    %c0_2 = arith.constant 0 : index
    %c0_3 = arith.constant 0 : index
    %4 = vector.load %arg3[%c0_2, %c0_3] : memref<256x512xbf16, #tpu.memory_space<vmem>>, vector<256x512xbf16>
    %c0_4 = arith.constant 0 : index
    %c0_5 = arith.constant 0 : index
    %5 = vector.load %arg4[%c0_4, %c0_5] : memref<512x256xbf16, #tpu.memory_space<vmem>>, vector<512x256xbf16>
    %cst = arith.constant dense<0.000000e+00> : vector<256x256xf32>
    %6 = tpu.matmul %4, %5, %cst {dimension_numbers = #tpu.dot_dimension_numbers<[1], [0], [0], [1], [0, 0, 1, 1], [], []>} : vector<256x512xbf16>, vector<512x256xbf16>, vector<256x256xf32> -> vector<256x256xf32>
    %7 = arith.addf %3, %6 : vector<256x256xf32>
    %c0_6 = arith.constant 0 : index
    %c0_7 = arith.constant 0 : index
    %8 = vector.load %arg7[%c0_6, %c0_7] : memref<256x256xf32, #tpu.memory_space<vmem>>, vector<256x256xf32>
    tpu.vector_store %arg7[%c0_6, %c0_7], %7 {strides = array<i32>} : memref<256x256xf32, #tpu.memory_space<vmem>>, vector<256x256xf32>,
    %c0_i32_8 = arith.constant 0 : i32
    %9 = arith.cmpi eq, %arg2, %c0_i32_8 : i32
    %10 = arith.extui %9 : i1 to i32
    %c0_i32_9 = arith.constant 0 : i32
    %11 = arith.cmpi ne, %10, %c0_i32_9 : i32
    scf.if %11 {
      %c0_14 = arith.constant 0 : index
      %c0_15 = arith.constant 0 : index
      %20 = vector.load %arg7[%c0_14, %c0_15] : memref<256x256xf32, #tpu.memory_space<vmem>>, vector<256x256xf32>
      %cst_16 = arith.constant -5.000000e-01 : f32
      %21 = vector.broadcast %cst_16 : f32 to vector<256x256xf32>
      %22 = arith.mulf %21, %20 : vector<256x256xf32>
      %c0_17 = arith.constant 0 : index
      %c0_18 = arith.constant 0 : index
      %23 = vector.load %arg5[%c0_17, %c0_18] : memref<256x256xbf16, #tpu.memory_space<vmem>>, vector<256x256xbf16>
      %24 = arith.extf %23 : vector<256x256xbf16> to vector<256x256xf32>
      %cst_19 = arith.constant 8.000000e-01 : f32
      %25 = vector.broadcast %cst_19 : f32 to vector<256x256xf32>
      %26 = arith.mulf %25, %24 : vector<256x256xf32>
      %27 = arith.addf %22, %26 : vector<256x256xf32>
      %c0_20 = arith.constant 0 : index
      %c0_21 = arith.constant 0 : index
      %28 = vector.load %arg7[%c0_20, %c0_21] : memref<256x256xf32, #tpu.memory_space<vmem>>, vector<256x256xf32>
      tpu.vector_store %arg7[%c0_20, %c0_21], %27 {strides = array<i32>} : memref<256x256xf32, #tpu.memory_space<vmem>>, vector<256x256xf32>,
    } else {
    }
    %c0_i32_10 = arith.constant 0 : i32
    %12 = arith.cmpi eq, %arg2, %c0_i32_10 : i32
    %13 = arith.cmpi eq, %arg0, %arg1 : i32
    %14 = arith.andi %12, %13 : i1
    %15 = arith.extui %14 : i1 to i32
    %c0_i32_11 = arith.constant 0 : i32
    %16 = arith.cmpi ne, %15, %c0_i32_11 : i32
    scf.if %16 {
      %c0_14 = arith.constant 0 : index
      %c0_15 = arith.constant 0 : index
      %20 = vector.load %arg7[%c0_14, %c0_15] : memref<256x256xf32, #tpu.memory_space<vmem>>, vector<256x256xf32>
      %21 = tpu.iota {dimensions = array<i32: 0>} : vector<256x256xi32>
      %22 = tpu.iota {dimensions = array<i32: 1>} : vector<256x256xi32>
      %23 = arith.cmpi eq, %21, %22 : vector<256x256xi32>
      %24 = arith.extui %23 : vector<256x256xi1> to vector<256x256xi32>
      %25 = arith.sitofp %24 : vector<256x256xi32> to vector<256x256xf32>
      %cst_16 = arith.constant 1.800000e-01 : f32
      %26 = vector.broadcast %cst_16 : f32 to vector<256x256xf32>
      %27 = arith.mulf %26, %25 : vector<256x256xf32>
      %28 = arith.addf %20, %27 : vector<256x256xf32>
      %c0_17 = arith.constant 0 : index
      %c0_18 = arith.constant 0 : index
      %29 = vector.load %arg7[%c0_17, %c0_18] : memref<256x256xf32, #tpu.memory_space<vmem>>, vector<256x256xf32>
      tpu.vector_store %arg7[%c0_17, %c0_18], %28 {strides = array<i32>} : memref<256x256xf32, #tpu.memory_space<vmem>>, vector<256x256xf32>,
    } else {
    }
    %c0_i32_12 = arith.constant 0 : i32
    %17 = arith.cmpi eq, %arg2, %c0_i32_12 : i32
    %18 = arith.extui %17 : i1 to i32
    %c0_i32_13 = arith.constant 0 : i32
    %19 = arith.cmpi ne, %18, %c0_i32_13 : i32
    scf.if %19 {
      %c0_14 = arith.constant 0 : index
      %c0_15 = arith.constant 0 : index
      %20 = vector.load %arg7[%c0_14, %c0_15] : memref<256x256xf32, #tpu.memory_space<vmem>>, vector<256x256xf32>
      %21 = arith.truncf %20 : vector<256x256xf32> to vector<256x256xbf16>
      %c0_16 = arith.constant 0 : index
      %c0_17 = arith.constant 0 : index
      %22 = vector.load %arg6[%c0_16, %c0_17] : memref<256x256xbf16, #tpu.memory_space<vmem>>, vector<256x256xbf16>
      tpu.vector_store %arg6[%c0_16, %c0_17], %21 {strides = array<i32>} : memref<256x256xbf16, #tpu.memory_space<vmem>>, vector<256x256xbf16>,
    } else {
    }
    return
  }
  func.func @transform_0(%arg0: i32, %arg1: i32, %arg2: i32) -> (i32, i32) {
    %c0_i32 = arith.constant 0 : i32
    return %arg0, %arg2 : i32, i32
  }
  func.func @transform_1(%arg0: i32, %arg1: i32, %arg2: i32) -> (i32, i32) {
    %c0_i32 = arith.constant 0 : i32
    return %arg2, %arg1 : i32, i32
  }
  func.func @transform_2(%arg0: i32, %arg1: i32, %arg2: i32) -> (i32, i32) {
    %c0_i32 = arith.constant 0 : i32
    return %arg0, %arg1 : i32, i32
  }
  func.func @transform_3(%arg0: i32, %arg1: i32, %arg2: i32) -> (i32, i32) {
    %c0_i32 = arith.constant 0 : i32
    return %arg0, %arg1 : i32, i32
  }
}

</mosaic_0001>

<llo_original>
// kernel: tpu_custom_call.1
$region0: #{tpu_custom_call.1}
  #allocation0 [shape = 'u32[]', space=smem, size = 0x4, offset = 0x4, fixed_abs, tag = 'smem constant byte address 0x4 - core index']
  #allocation1 [shape = 'u32[144,128]{1,0:T(1,128)}', space=vmem, size = 0x12000, scoped, tag = 'internal scratch']
  #allocation2 [shape = 'f32[256,256]{1,0:T(8,128)}', space=vmem, size = 0x40000, scoped, tag = 'scratch operand']
  %s0 = inlined_call_operand.hbm [shape: bf16[512,512], index: 0, kind: input, shape index: {}]
  %s1 = inlined_call_operand.hbm [shape: bf16[512,512], index: 1, kind: input, shape index: {}]
  %s2 = inlined_call_operand.hbm [shape: bf16[512,512], index: 2, kind: input, shape index: {}]
  %s3 = inlined_call_operand.hbm [shape: bf16[512,512], index: 3, kind: output, shape index: {}]
  %s4 = sld [smem:[#allocation0]]
  $region73: #{tpu_custom_call.1} parent=0
    _
  %s6 = ssub.s32 1, %s4
  %s7 = scalar_select 0, %s6, %s4
  $region1: #{tpu_custom_call.1} parent=0
    #allocation3 [shape = 'u8[524288]{0}', space=vmem, size = 0x80000, scoped, tag = 'input window, operand 0']
    #allocation4 [shape = 's32[2]{0}', space=sflag, size = 0x8, scoped, tag = 'scoped memory for tpu_custom_call.1']
    #allocation5 [shape = 's32[2]{0}', space=sflag, size = 0x8, scoped, tag = 'scoped memory for tpu_custom_call.1']
    #allocation6 [shape = 'u8[524288]{0}', space=vmem, size = 0x80000, scoped, tag = 'input window, operand 1']
    #allocation7 [shape = 's32[2]{0}', space=sflag, size = 0x8, scoped, tag = 'scoped memory for tpu_custom_call.1']
    #allocation8 [shape = 'u8[262144]{0}', space=vmem, size = 0x40000, scoped, tag = 'input window, operand 2']
    #allocation9 [shape = 'u8[262144]{0}', space=vmem, size = 0x40000, scoped, tag = 'output window, operand 0']
    %8 = vsyncpa [#allocation4], 0
    %s9 = scalar_lea.sflag [#allocation4], 1
    %10 = vsyncpa %s9, 0
    %11 = vsyncpa [#allocation7], 0
    %s12 = scalar_lea.sflag [#allocation7], 1
    %13 = vsyncpa %s12, 0
    %14 = vsyncpa [#allocation5], 0
    %s15 = scalar_lea.sflag [#allocation5], 1
    %16 = vsyncpa %s15, 0
    loop: start=0, step=1, limit=6
    $region2: #{tpu_custom_call.1} parent=1 // loop_pre_header
      _
    $region3: #{tpu_custom_call.1} parent=1 // loop_header
      %s18 = sphi 0, %s22
      %p19 = scmp.ge.s32.totalorder %s18, 6
      %s25 = sphi 0, %s44
      %s26 = sphi 0, %s40
      %s27 = sphi 0, %s36
      %s28 = sphi 0, %s25
      %s29 = sphi 0, %s26
      %s30 = sphi 0, %s27
      %s31 = sphi 0, %s28
      %s32 = sphi 0, %s29
      %s33 = sphi 0, %s30
      %s49 = sphi 0, %s51
      %s52 = sphi 0, %s49
      %s53 = sphi 0, %s52
      %s69 = sphi 0, %s53
      %s77 = sphi 0, %s79
      %s80 = sphi 0, %s77
      %s81 = sphi 0, %s80
      %s97 = sphi 0, %s81
      %s105 = sphi 0, %s107
      %s108 = sphi 0, %s105
      %s109 = sphi 0, %s108
      %s125 = sphi 0, %s109
      %s133 = sphi 0, %s135
      %s136 = sphi 0, %s133
      %s137 = sphi 0, %s136
      %s153 = sphi 0, %s137
    $region4: #{tpu_custom_call.1} parent=1 // loop_header_branch
      %21 = sbr.rel (%p19) target = $region8
    $region5: #{tpu_custom_call.1} parent=1 // loop_body
      %s23 = ssub.s32 %s18, 1
      %s24 = ssub.s32 %s18, 2
      %s34 = sadd.s32 1, %s27
      %p35 = scmp.ge.s32.totalorder %s34, 1
      %s36 = scalar_select %p35, 0, %s34
      %s37 = sadd.s32 1, %s26
      %s38 = scalar_select %p35, %s37, %s26
      %p39 = scmp.ge.s32.totalorder %s38, 2
      %s40 = scalar_select %p39, 0, %s38
      %s41 = sadd.s32 1, %s25
      %s42 = scalar_select %p39, %s41, %s25
      %p43 = scmp.ge.s32.totalorder %s42, 2
      %s44 = scalar_select %p43, 0, %s42
      %s45 = ssub.s32 %s25, %s44
      %s46 = ssub.s32 %s27, %s36
      %s47 = sor.u32 %s45, %s46
      %p48 = scmp.eq.s32.totalorder %s47, 0
      %s50 = sadd.s32 %s49, 1
      %s51 = scalar_select %p48, %s49, %s50
      %p54 = pneg %p48
      %p55 = scmp.eq.s32.totalorder %s18, 3
      %p56 = por %p54, %p55
      %p57 = scmp.ne.s32.totalorder %s49, %s52
      %p58 = scmp.eq.s32.totalorder %s18, 0
      %p59 = por %p57, %p58
      %p60 = scmp.ne.s32.totalorder %s49, %s52
      %p61 = scmp.eq.s32.totalorder %s23, 3
      %p62 = por %p60, %p61
      %p63 = scmp.ne.s32.totalorder %s52, %s53
      %p64 = scmp.eq.s32.totalorder %s23, 0
      %p65 = por %p63, %p64
      %p66 = scmp.ne.s32.totalorder %s52, %s53
      %p67 = scmp.eq.s32.totalorder %s24, 3
      %p68 = por %p66, %p67
      %p70 = scmp.ne.s32.totalorder %s53, %s69
      %p71 = scmp.eq.s32.totalorder %s24, 0
      %p72 = por %p70, %p71
      %s73 = ssub.s32 %s27, %s36
      %s74 = ssub.s32 %s26, %s40
      %s75 = sor.u32 %s73, %s74
      %p76 = scmp.eq.s32.totalorder %s75, 0
      %s78 = sadd.s32 %s77, 1
      %s79 = scalar_select %p76, %s77, %s78
      %p82 = pneg %p76
      %p83 = scmp.eq.s32.totalorder %s18, 3
      %p84 = por %p82, %p83
      %p85 = scmp.ne.s32.totalorder %s77, %s80
      %p86 = scmp.eq.s32.totalorder %s18, 0
      %p87 = por %p85, %p86
      %p88 = scmp.ne.s32.totalorder %s77, %s80
      %p89 = scmp.eq.s32.totalorder %s23, 3
      %p90 = por %p88, %p89
      %p91 = scmp.ne.s32.totalorder %s80, %s81
      %p92 = scmp.eq.s32.totalorder %s23, 0
      %p93 = por %p91, %p92
      %p94 = scmp.ne.s32.totalorder %s80, %s81
      %p95 = scmp.eq.s32.totalorder %s24, 3
      %p96 = por %p94, %p95
      %p98 = scmp.ne.s32.totalorder %s81, %s97
      %p99 = scmp.eq.s32.totalorder %s24, 0
      %p100 = por %p98, %p99
      %s101 = ssub.s32 %s25, %s44
      %s102 = ssub.s32 %s26, %s40
      %s103 = sor.u32 %s101, %s102
      %p104 = scmp.eq.s32.totalorder %s103, 0
      %s106 = sadd.s32 %s105, 1
      %s107 = scalar_select %p104, %s105, %s106
      %p110 = pneg %p104
      %p111 = scmp.eq.s32.totalorder %s18, 3
      %p112 = por %p110, %p111
      %p113 = scmp.ne.s32.totalorder %s105, %s108
      %p114 = scmp.eq.s32.totalorder %s18, 0
      %p115 = por %p113, %p114
      %p116 = scmp.ne.s32.totalorder %s105, %s108
      %p117 = scmp.eq.s32.totalorder %s23, 3
      %p118 = por %p116, %p117
      %p119 = scmp.ne.s32.totalorder %s108, %s109
      %p120 = scmp.eq.s32.totalorder %s23, 0
      %p121 = por %p119, %p120
      %p122 = scmp.ne.s32.totalorder %s108, %s109
      %p123 = scmp.eq.s32.totalorder %s24, 3
      %p124 = por %p122, %p123
      %p126 = scmp.ne.s32.totalorder %s109, %s125
      %p127 = scmp.eq.s32.totalorder %s24, 0
      %p128 = por %p126, %p127
      %s129 = ssub.s32 %s25, %s44
      %s130 = ssub.s32 %s26, %s40
      %s131 = sor.u32 %s129, %s130
      %p132 = scmp.eq.s32.totalorder %s131, 0
      %s134 = sadd.s32 %s133, 1
      %s135 = scalar_select %p132, %s133, %s134
      %p138 = pneg %p132
      %p139 = scmp.eq.s32.totalorder %s18, 3
      %p140 = por %p138, %p139
      %p141 = scmp.ne.s32.totalorder %s133, %s136
      %p142 = scmp.eq.s32.totalorder %s18, 0
      %p143 = por %p141, %p142
      %p144 = scmp.ne.s32.totalorder %s133, %s136
      %p145 = scmp.eq.s32.totalorder %s23, 3
      %p146 = por %p144, %p145
      %p147 = scmp.ne.s32.totalorder %s136, %s137
      %p148 = scmp.eq.s32.totalorder %s23, 0
      %p149 = por %p147, %p148
      %p150 = scmp.ne.s32.totalorder %s136, %s137
      %p151 = scmp.eq.s32.totalorder %s24, 3
      %p152 = por %p150, %p151
      %p154 = scmp.ne.s32.totalorder %s137, %s153
      %p155 = scmp.eq.s32.totalorder %s24, 0
      %p156 = por %p154, %p155
      %p157 = scmp.le.s32.totalorder 1, %s18
      %p158 = scmp.lt.s32.totalorder %s18, 5
      %p159 = pnand %p157, %p158
      %p160 = pneg %p159
      // Predicated region
      $region9: #{tpu_custom_call.1} parent=5 // pred_check
        _
      $region10: #{tpu_custom_call.1} parent=5 // pred_check_branch
        %162 = sbr.rel (%p159) target = $region12
      $region11: #{tpu_custom_call.1} parent=5 // pred_region
        %s163 = ssub.s32 %s18, 1
      $region12: #{tpu_custom_call.1} parent=5 // pred_fallthru
        _
      %p164 = scmp.lt.s32.totalorder %s18, 4
      // Predicated region
      $region13: #{tpu_custom_call.1} parent=5 // pred_check
        %p165 = pneg %p164
      $region14: #{tpu_custom_call.1} parent=5 // pred_check_branch
        %167 = sbr.rel (%p165) target = $region16
      $region15: #{tpu_custom_call.1} parent=5 // pred_region
        // Predicated region
        $region17: #{tpu_custom_call.1} parent=15 // pred_check
          %p168 = pneg %p59
        $region18: #{tpu_custom_call.1} parent=15 // pred_check_branch
          %170 = sbr.rel (%p168) target = $region20
        $region19: #{tpu_custom_call.1} parent=15 // pred_region
          %s171 = sand.u32 %s49, 1
          %s172 = scalar_lea.sflag [#allocation4], %s171
          %s173 = sand.u32 %s49, 1
          %s174 = smul.addr %s173, 512
          %s175 = scalar_lea.vmem [#allocation3], %s174
          %s176 = smul.u32 32, %s25
          %s177 = smul.u32 4, %s27
          %s179 = ssub.s32 8192, 8192
          %180 = vsyncadd %s172, %s179
          %s181 = smul.addr %s176, 4
          %s182 = sadd.s32 %s177, %s181
          %s183 = smul.addr %s182, 64
          %s184 = scalar_lea.hbm %s0, %s183
          %s185 = sshll.u32 %s175, 4
          %s186 = int_to_ptr.vmem [resolvable:$true] %s185
          %191 = dma.hbm_to_vmem [thread:$0]  %s184, 8192, %s186, %s172, 256, 256, 16
        $region20: #{tpu_custom_call.1} parent=15 // pred_fallthru
          _
        // Predicated region
        $region21: #{tpu_custom_call.1} parent=15 // pred_check
          %p192 = pneg %p87
        $region22: #{tpu_custom_call.1} parent=15 // pred_check_branch
          %194 = sbr.rel (%p192) target = $region24
        $region23: #{tpu_custom_call.1} parent=15 // pred_region
          %s195 = sand.u32 %s18, 1
          %s196 = scalar_lea.sflag [#allocation7], %s195
          %s197 = sand.u32 %s77, 1
          %s198 = smul.addr %s197, 512
          %s199 = scalar_lea.vmem [#allocation6], %s198
          %s200 = smul.u32 64, %s27
          %s201 = smul.u32 2, %s26
          %s203 = ssub.s32 8192, 8192
          %204 = vsyncadd %s196, %s203
          %s205 = smul.addr %s200, 4
          %s206 = sadd.s32 %s201, %s205
          %s207 = smul.addr %s206, 64
          %s208 = scalar_lea.hbm %s1, %s207
          %s209 = sshll.u32 %s199, 4
          %s210 = int_to_ptr.vmem [resolvable:$true] %s209
          %215 = dma.hbm_to_vmem [thread:$0]  %s208, 8192, %s210, %s196, 256, 128, 8
        $region24: #{tpu_custom_call.1} parent=15 // pred_fallthru
          _
        // Predicated region
        $region25: #{tpu_custom_call.1} parent=15 // pred_check
          %p216 = pneg %p115
        $region26: #{tpu_custom_call.1} parent=15 // pred_check_branch
          %218 = sbr.rel (%p216) target = $region28
        $region27: #{tpu_custom_call.1} parent=15 // pred_region
          %s219 = sand.u32 %s18, 1
          %s220 = scalar_lea.sflag [#allocation7], %s219
          %s221 = sand.u32 %s105, 1
          %s222 = smul.addr %s221, 256
          %s223 = scalar_lea.vmem [#allocation8], %s222
          %s224 = smul.u32 32, %s25
          %s225 = smul.u32 2, %s26
          %s227 = ssub.s32 4096, 4096
          %228 = vsyncadd %s220, %s227
          %s229 = smul.addr %s224, 4
          %s230 = sadd.s32 %s225, %s229
          %s231 = smul.addr %s230, 64
          %s232 = scalar_lea.hbm %s2, %s231
          %s233 = sshll.u32 %s223, 4
          %s234 = int_to_ptr.vmem [resolvable:$true] %s233
          %239 = dma.hbm_to_vmem [thread:$0]  %s232, 4096, %s234, %s220, 256, 128, 8
        $region28: #{tpu_custom_call.1} parent=15 // pred_fallthru
          _
      $region16: #{tpu_custom_call.1} parent=5 // pred_fallthru
        _
      %p240 = scmp.le.s32.totalorder 1, %s18
      %p241 = scmp.lt.s32.totalorder %s18, 5
      %p242 = pnand %p240, %p241
      %p243 = pneg %p242
      // Predicated region
      $region29: #{tpu_custom_call.1} parent=5 // pred_check
        _
      $region30: #{tpu_custom_call.1} parent=5 // pred_check_branch
        %245 = sbr.rel (%p242) target = $region32
      $region31: #{tpu_custom_call.1} parent=5 // pred_region
        %s246 = ssub.s32 %s18, 1
        %s247 = sand.u32 %s52, 1
        %s248 = scalar_lea.sflag [#allocation4], %s247
        %s249 = sand.u32 %s52, 1
        %s250 = smul.addr %s249, 512
        %s251 = scalar_lea.vmem [#allocation3], %s250
        // Predicated region
        $region33: #{tpu_custom_call.1} parent=31 // pred_check
          %p252 = pneg %p65
        $region34: #{tpu_custom_call.1} parent=31 // pred_check_branch
          %254 = sbr.rel (%p252) target = $region36
        $region35: #{tpu_custom_call.1} parent=31 // pred_region
          %255 = dma.done %s248, 8192
        $region36: #{tpu_custom_call.1} parent=31 // pred_fallthru
          _
        %s256 = sand.u32 %s23, 1
        %s257 = scalar_lea.sflag [#allocation7], %s256
        %s258 = sand.u32 %s80, 1
        %s259 = smul.addr %s258, 512
        %s260 = scalar_lea.vmem [#allocation6], %s259
        // Predicated region
        $region37: #{tpu_custom_call.1} parent=31 // pred_check
          %p261 = pneg %p93
        $region38: #{tpu_custom_call.1} parent=31 // pred_check_branch
          %263 = sbr.rel (%p261) target = $region40
        $region39: #{tpu_custom_call.1} parent=31 // pred_region
          %264 = dma.done %s257, 8192
        $region40: #{tpu_custom_call.1} parent=31 // pred_fallthru
          _
        %s265 = sand.u32 %s23, 1
        %s266 = scalar_lea.sflag [#allocation7], %s265
        %s267 = sand.u32 %s108, 1
        %s268 = smul.addr %s267, 256
        %s269 = scalar_lea.vmem [#allocation8], %s268
        // Predicated region
        $region41: #{tpu_custom_call.1} parent=31 // pred_check
          %p270 = pneg %p121
        $region42: #{tpu_custom_call.1} parent=31 // pred_check_branch
          %272 = sbr.rel (%p270) target = $region44
        $region43: #{tpu_custom_call.1} parent=31 // pred_region
          %273 = dma.done %s266, 4096
        $region44: #{tpu_custom_call.1} parent=31 // pred_fallthru
          _
        %s274 = sand.u32 %s52, 1
        %s275 = scalar_lea.sflag [#allocation4], %s274
        %s276 = sand.u32 %s52, 1
        %s277 = smul.addr %s276, 512
        %s278 = scalar_lea.vmem [#allocation3], %s277
        %p279 = pneg %p65
        %p280 = pneg %p62
        %s281 = sand.u32 %s23, 1
        %s282 = scalar_lea.sflag [#allocation7], %s281
        %s283 = sand.u32 %s80, 1
        %s284 = smul.addr %s283, 512
        %s285 = scalar_lea.vmem [#allocation6], %s284
        %p286 = pneg %p93
        %p287 = pneg %p90
        %s288 = sand.u32 %s23, 1
        %s289 = scalar_lea.sflag [#allocation7], %s288
        %s290 = sand.u32 %s108, 1
        %s291 = smul.addr %s290, 256
        %s292 = scalar_lea.vmem [#allocation8], %s291
        %p293 = pneg %p121
        %p294 = pneg %p118
        %p295 = pneg %p149
        %p296 = pneg %p146
        %s297 = sand.u32 %s136, 1
        %s298 = scalar_lea.sflag [#allocation5], %s297
        %s299 = sand.u32 %s136, 1
        %s300 = smul.addr %s299, 256
        %s301 = scalar_lea.vmem [#allocation9], %s300
        %s302 = smul.u32 32, %s28
        %s303 = smul.u32 4, %s30
        %s304 = smul.u32 64, %s30
        %s305 = smul.u32 2, %s29
        %s306 = smul.u32 32, %s28
        %s307 = smul.u32 2, %s29
        %s308 = smul.u32 32, %s28
        %s309 = smul.u32 2, %s29
        %p310 = scmp.eq.s32.totalorder %s30, 0
        // Predicated region
        $region45: #{tpu_custom_call.1} parent=31 // pred_check
          %p311 = pneg %p310
        $region46: #{tpu_custom_call.1} parent=31 // pred_check_branch
          %313 = sbr.rel (%p311) target = $region48
        $region47: #{tpu_custom_call.1} parent=31 // pred_region
          %314 = vst [vmem:[#allocation2] sm:$0xff] 0.0
          %315 = vst [vmem:[#allocation2 + $0x8] sm:$0xff] 0.0
          %316 = vst [vmem:[#allocation2 + $0x10] sm:$0xff] 0.0
          %317 = vst [vmem:[#allocation2 + $0x18] sm:$0xff] 0.0
          %318 = vst [vmem:[#allocation2 + $0x20] sm:$0xff] 0.0
          %319 = vst [vmem:[#allocation2 + $0x28] sm:$0xff] 0.0
          %320 = vst [vmem:[#allocation2 + $0x30] sm:$0xff] 0.0
          %321 = vst [vmem:[#allocation2 + $0x38] sm:$0xff] 0.0
          %322 = vst [vmem:[#allocation2 + $0x40] sm:$0xff] 0.0
          %323 = vst [vmem:[#allocation2 + $0x48] sm:$0xff] 0.0
          %324 = vst [vmem:[#allocation2 + $0x50] sm:$0xff] 0.0
          %325 = vst [vmem:[#allocation2 + $0x58] sm:$0xff] 0.0
          %326 = vst [vmem:[#allocation2 + $0x60] sm:$0xff] 0.0
          %327 = vst [vmem:[#allocation2 + $0x68] sm:$0xff] 0.0
          %328 = vst [vmem:[#allocation2 + $0x70] sm:$0xff] 0.0
          %329 = vst [vmem:[#allocation2 + $0x78] sm:$0xff] 0.0
          %330 = vst [vmem:[#allocation2 + $0x80] sm:$0xff] 0.0
          %331 = vst [vmem:[#allocation2 + $0x88] sm:$0xff] 0.0
          %332 = vst [vmem:[#allocation2 + $0x90] sm:$0xff] 0.0
          %333 = vst [vmem:[#allocation2 + $0x98] sm:$0xff] 0.0
          %334 = vst [vmem:[#allocation2 + $0xa0] sm:$0xff] 0.0
          %335 = vst [vmem:[#allocation2 + $0xa8] sm:$0xff] 0.0
          %336 = vst [vmem:[#allocation2 + $0xb0] sm:$0xff] 0.0
          %337 = vst [vmem:[#allocation2 + $0xb8] sm:$0xff] 0.0
          %338 = vst [vmem:[#allocation2 + $0xc0] sm:$0xff] 0.0
          %339 = vst [vmem:[#allocation2 + $0xc8] sm:$0xff] 0.0
          %340 = vst [vmem:[#allocation2 + $0xd0] sm:$0xff] 0.0
          %341 = vst [vmem:[#allocation2 + $0xd8] sm:$0xff] 0.0
          %342 = vst [vmem:[#allocation2 + $0xe0] sm:$0xff] 0.0
          %343 = vst [vmem:[#allocation2 + $0xe8] sm:$0xff] 0.0
          %344 = vst [vmem:[#allocation2 + $0xf0] sm:$0xff] 0.0
          %345 = vst [vmem:[#allocation2 + $0xf8] sm:$0xff] 0.0
          %346 = vst [vmem:[#allocation2 + $0x100] sm:$0xff] 0.0
          %347 = vst [vmem:[#allocation2 + $0x108] sm:$0xff] 0.0
          %348 = vst [vmem:[#allocation2 + $0x110] sm:$0xff] 0.0
          %349 = vst [vmem:[#allocation2 + $0x118] sm:$0xff] 0.0
          %350 = vst [vmem:[#allocation2 + $0x120] sm:$0xff] 0.0
          %351 = vst [vmem:[#allocation2 + $0x128] sm:$0xff] 0.0
          %352 = vst [vmem:[#allocation2 + $0x130] sm:$0xff] 0.0
          %353 = vst [vmem:[#allocation2 + $0x138] sm:$0xff] 0.0
          %354 = vst [vmem:[#allocation2 + $0x140] sm:$0xff] 0.0
          %355 = vst [vmem:[#allocation2 + $0x148] sm:$0xff] 0.0
          %356 = vst [vmem:[#allocation2 + $0x150] sm:$0xff] 0.0
          %357 = vst [vmem:[#allocation2 + $0x158] sm:$0xff] 0.0
          %358 = vst [vmem:[#allocation2 + $0x160] sm:$0xff] 0.0
          %359 = vst [vmem:[#allocation2 + $0x168] sm:$0xff] 0.0
          %360 = vst [vmem:[#allocation2 + $0x170] sm:$0xff] 0.0
          %361 = vst [vmem:[#allocation2 + $0x178] sm:$0xff] 0.0
          %362 = vst [vmem:[#allocation2 + $0x180] sm:$0xff] 0.0
          %363 = vst [vmem:[#allocation2 + $0x188] sm:$0xff] 0.0
          %364 = vst [vmem:[#allocation2 + $0x190] sm:$0xff] 0.0
          %365 = vst [vmem:[#allocation2 + $0x198] sm:$0xff] 0.0
          %366 = vst [vmem:[#allocation2 + $0x1a0] sm:$0xff] 0.0
          %367 = vst [vmem:[#allocation2 + $0x1a8] sm:$0xff] 0.0
          %368 = vst [vmem:[#allocation2 + $0x1b0] sm:$0xff] 0.0
          %369 = vst [vmem:[#allocation2 + $0x1b8] sm:$0xff] 0.0
          %370 = vst [vmem:[#allocation2 + $0x1c0] sm:$0xff] 0.0
          %371 = vst [vmem:[#allocation2 + $0x1c8] sm:$0xff] 0.0
          %372 = vst [vmem:[#allocation2 + $0x1d0] sm:$0xff] 0.0
          %373 = vst [vmem:[#allocation2 + $0x1d8] sm:$0xff] 0.0
          %374 = vst [vmem:[#allocation2 + $0x1e0] sm:$0xff] 0.0
          %375 = vst [vmem:[#allocation2 + $0x1e8] sm:$0xff] 0.0
          %376 = vst [vmem:[#allocation2 + $0x1f0] sm:$0xff] 0.0
          %377 = vst [vmem:[#allocation2 + $0x1f8] sm:$0xff] 0.0
        $region48: #{tpu_custom_call.1} parent=31 // pred_fallthru
          _
        %v378 = vld [vmem:[#allocation2] sm:$0xff]
        %v379 = vld [vmem:[#allocation2 + $0x8] sm:$0xff]
        %v380 = vld [vmem:[#allocation2 + $0x10] sm:$0xff]
        %v381 = vld [vmem:[#allocation2 + $0x18] sm:$0xff]
        %v382 = vld [vmem:[#allocation2 + $0x20] sm:$0xff]
        %v383 = vld [vmem:[#allocation2 + $0x28] sm:$0xff]
        %v384 = vld [vmem:[#allocation2 + $0x30] sm:$0xff]
        %v385 = vld [vmem:[#allocation2 + $0x38] sm:$0xff]
        %v386 = vld [vmem:[#allocation2 + $0x40] sm:$0xff]
        %v387 = vld [vmem:[#allocation2 + $0x48] sm:$0xff]
        %v388 = vld [vmem:[#allocation2 + $0x50] sm:$0xff]
        %v389 = vld [vmem:[#allocation2 + $0x58] sm:$0xff]
        %v390 = vld [vmem:[#allocation2 + $0x60] sm:$0xff]
        %v391 = vld [vmem:[#allocation2 + $0x68] sm:$0xff]
        %v392 = vld [vmem:[#allocation2 + $0x70] sm:$0xff]
        %v393 = vld [vmem:[#allocation2 + $0x78] sm:$0xff]
        %v394 = vld [vmem:[#allocation2 + $0x80] sm:$0xff]
        %v395 = vld [vmem:[#allocation2 + $0x88] sm:$0xff]
        %v396 = vld [vmem:[#allocation2 + $0x90] sm:$0xff]
        %v397 = vld [vmem:[#allocation2 + $0x98] sm:$0xff]
        %v398 = vld [vmem:[#allocation2 + $0xa0] sm:$0xff]
        %v399 = vld [vmem:[#allocation2 + $0xa8] sm:$0xff]
        %v400 = vld [vmem:[#allocation2 + $0xb0] sm:$0xff]
        %v401 = vld [vmem:[#allocation2 + $0xb8] sm:$0xff]
        %v402 = vld [vmem:[#allocation2 + $0xc0] sm:$0xff]
        %v403 = vld [vmem:[#allocation2 + $0xc8] sm:$0xff]
        %v404 = vld [vmem:[#allocation2 + $0xd0] sm:$0xff]
        %v405 = vld [vmem:[#allocation2 + $0xd8] sm:$0xff]
        %v406 = vld [vmem:[#allocation2 + $0xe0] sm:$0xff]
        %v407 = vld [vmem:[#allocation2 + $0xe8] sm:$0xff]
        %v408 = vld [vmem:[#allocation2 + $0xf0] sm:$0xff]
        %v409 = vld [vmem:[#allocation2 + $0xf8] sm:$0xff]
        %v410 = vld [vmem:[#allocation2 + $0x100] sm:$0xff]
        %v411 = vld [vmem:[#allocation2 + $0x108] sm:$0xff]
        %v412 = vld [vmem:[#allocation2 + $0x110] sm:$0xff]
        %v413 = vld [vmem:[#allocation2 + $0x118] sm:$0xff]
        %v414 = vld [vmem:[#allocation2 + $0x120] sm:$0xff]
        %v415 = vld [vmem:[#allocation2 + $0x128] sm:$0xff]
        %v416 = vld [vmem:[#allocation2 + $0x130] sm:$0xff]
        %v417 = vld [vmem:[#allocation2 + $0x138] sm:$0xff]
        %v418 = vld [vmem:[#allocation2 + $0x140] sm:$0xff]
        %v419 = vld [vmem:[#allocation2 + $0x148] sm:$0xff]
        %v420 = vld [vmem:[#allocation2 + $0x150] sm:$0xff]
        %v421 = vld [vmem:[#allocation2 + $0x158] sm:$0xff]
        %v422 = vld [vmem:[#allocation2 + $0x160] sm:$0xff]
        %v423 = vld [vmem:[#allocation2 + $0x168] sm:$0xff]
        %v424 = vld [vmem:[#allocation2 + $0x170] sm:$0xff]
        %v425 = vld [vmem:[#allocation2 + $0x178] sm:$0xff]
        %v426 = vld [vmem:[#allocation2 + $0x180] sm:$0xff]
        %v427 = vld [vmem:[#allocation2 + $0x188] sm:$0xff]
        %v428 = vld [vmem:[#allocation2 + $0x190] sm:$0xff]
        %v429 = vld [vmem:[#allocation2 + $0x198] sm:$0xff]
        %v430 = vld [vmem:[#allocation2 + $0x1a0] sm:$0xff]
        %v431 = vld [vmem:[#allocation2 + $0x1a8] sm:$0xff]
        %v432 = vld [vmem:[#allocation2 + $0x1b0] sm:$0xff]
        %v433 = vld [vmem:[#allocation2 + $0x1b8] sm:$0xff]
        %v434 = vld [vmem:[#allocation2 + $0x1c0] sm:$0xff]
        %v435 = vld [vmem:[#allocation2 + $0x1c8] sm:$0xff]
        %v436 = vld [vmem:[#allocation2 + $0x1d0] sm:$0xff]
        %v437 = vld [vmem:[#allocation2 + $0x1d8] sm:$0xff]
        %v438 = vld [vmem:[#allocation2 + $0x1e0] sm:$0xff]
        %v439 = vld [vmem:[#allocation2 + $0x1e8] sm:$0xff]
        %v440 = vld [vmem:[#allocation2 + $0x1f0] sm:$0xff]
        %v441 = vld [vmem:[#allocation2 + $0x1f8] sm:$0xff]
        %v442 = vld [vmem:[%s251] sm:$0xff]
        %v443 = vld [vmem:[%s251 + $0x8] sm:$0xff]
        %v444 = vld [vmem:[%s251 + $0x10] sm:$0xff]
        %v445 = vld [vmem:[%s251 + $0x18] sm:$0xff]
        %v446 = vld [vmem:[%s251 + $0x20] sm:$0xff]
        %v447 = vld [vmem:[%s251 + $0x28] sm:$0xff]
        %v448 = vld [vmem:[%s251 + $0x30] sm:$0xff]
        %v449 = vld [vmem:[%s251 + $0x38] sm:$0xff]
        %v450 = vld [vmem:[%s251 + $0x40] sm:$0xff]
        %v451 = vld [vmem:[%s251 + $0x48] sm:$0xff]
        %v452 = vld [vmem:[%s251 + $0x50] sm:$0xff]
        %v453 = vld [vmem:[%s251 + $0x58] sm:$0xff]
        %v454 = vld [vmem:[%s251 + $0x60] sm:$0xff]
        %v455 = vld [vmem:[%s251 + $0x68] sm:$0xff]
        %v456 = vld [vmem:[%s251 + $0x70] sm:$0xff]
        %v457 = vld [vmem:[%s251 + $0x78] sm:$0xff]
        %v458 = vld [vmem:[%s251 + $0x80] sm:$0xff]
        %v459 = vld [vmem:[%s251 + $0x88] sm:$0xff]
        %v460 = vld [vmem:[%s251 + $0x90] sm:$0xff]
        %v461 = vld [vmem:[%s251 + $0x98] sm:$0xff]
        %v462 = vld [vmem:[%s251 + $0xa0] sm:$0xff]
        %v463 = vld [vmem:[%s251 + $0xa8] sm:$0xff]
        %v464 = vld [vmem:[%s251 + $0xb0] sm:$0xff]
        %v465 = vld [vmem:[%s251 + $0xb8] sm:$0xff]
        %v466 = vld [vmem:[%s251 + $0xc0] sm:$0xff]
        %v467 = vld [vmem:[%s251 + $0xc8] sm:$0xff]
        %v468 = vld [vmem:[%s251 + $0xd0] sm:$0xff]
        %v469 = vld [vmem:[%s251 + $0xd8] sm:$0xff]
        %v470 = vld [vmem:[%s251 + $0xe0] sm:$0xff]
        %v471 = vld [vmem:[%s251 + $0xe8] sm:$0xff]
        %v472 = vld [vmem:[%s251 + $0xf0] sm:$0xff]
        %v473 = vld [vmem:[%s251 + $0xf8] sm:$0xff]
        %v474 = vld [vmem:[%s251 + $0x100] sm:$0xff]
        %v475 = vld [vmem:[%s251 + $0x108] sm:$0xff]
        %v476 = vld [vmem:[%s251 + $0x110] sm:$0xff]
        %v477 = vld [vmem:[%s251 + $0x118] sm:$0xff]
        %v478 = vld [vmem:[%s251 + $0x120] sm:$0xff]
        %v479 = vld [vmem:[%s251 + $0x128] sm:$0xff]
        %v480 = vld [vmem:[%s251 + $0x130] sm:$0xff]
        %v481 = vld [vmem:[%s251 + $0x138] sm:$0xff]
        %v482 = vld [vmem:[%s251 + $0x140] sm:$0xff]
        %v483 = vld [vmem:[%s251 + $0x148] sm:$0xff]
        %v484 = vld [vmem:[%s251 + $0x150] sm:$0xff]
        %v485 = vld [vmem:[%s251 + $0x158] sm:$0xff]
        %v486 = vld [vmem:[%s251 + $0x160] sm:$0xff]
        %v487 = vld [vmem:[%s251 + $0x168] sm:$0xff]
        %v488 = vld [vmem:[%s251 + $0x170] sm:$0xff]
        %v489 = vld [vmem:[%s251 + $0x178] sm:$0xff]
        %v490 = vld [vmem:[%s251 + $0x180] sm:$0xff]
        %v491 = vld [vmem:[%s251 + $0x188] sm:$0xff]
        %v492 = vld [vmem:[%s251 + $0x190] sm:$0xff]
        %v493 = vld [vmem:[%s251 + $0x198] sm:$0xff]
        %v494 = vld [vmem:[%s251 + $0x1a0] sm:$0xff]
        %v495 = vld [vmem:[%s251 + $0x1a8] sm:$0xff]
        %v496 = vld [vmem:[%s251 + $0x1b0] sm:$0xff]
        %v497 = vld [vmem:[%s251 + $0x1b8] sm:$0xff]
        %v498 = vld [vmem:[%s251 + $0x1c0] sm:$0xff]
        %v499 = vld [vmem:[%s251 + $0x1c8] sm:$0xff]
        %v500 = vld [vmem:[%s251 + $0x1d0] sm:$0xff]
        %v501 = vld [vmem:[%s251 + $0x1d8] sm:$0xff]
        %v502 = vld [vmem:[%s251 + $0x1e0] sm:$0xff]
        %v503 = vld [vmem:[%s251 + $0x1e8] sm:$0xff]
        %v504 = vld [vmem:[%s251 + $0x1f0] sm:$0xff]
        %v505 = vld [vmem:[%s251 + $0x1f8] sm:$0xff]
        %v506 = vld [vmem:[%s260] sm:$0xff]
        %v507 = vld [vmem:[%s260 + $0x8] sm:$0xff]
        %v508 = vld [vmem:[%s260 + $0x10] sm:$0xff]
        %v509 = vld [vmem:[%s260 + $0x18] sm:$0xff]
        %v510 = vld [vmem:[%s260 + $0x20] sm:$0xff]
        %v511 = vld [vmem:[%s260 + $0x28] sm:$0xff]
        %v512 = vld [vmem:[%s260 + $0x30] sm:$0xff]
        %v513 = vld [vmem:[%s260 + $0x38] sm:$0xff]
        %v514 = vld [vmem:[%s260 + $0x40] sm:$0xff]
        %v515 = vld [vmem:[%s260 + $0x48] sm:$0xff]
        %v516 = vld [vmem:[%s260 + $0x50] sm:$0xff]
        %v517 = vld [vmem:[%s260 + $0x58] sm:$0xff]
        %v518 = vld [vmem:[%s260 + $0x60] sm:$0xff]
        %v519 = vld [vmem:[%s260 + $0x68] sm:$0xff]
        %v520 = vld [vmem:[%s260 + $0x70] sm:$0xff]
        %v521 = vld [vmem:[%s260 + $0x78] sm:$0xff]
        %v522 = vld [vmem:[%s260 + $0x80] sm:$0xff]
        %v523 = vld [vmem:[%s260 + $0x88] sm:$0xff]
        %v524 = vld [vmem:[%s260 + $0x90] sm:$0xff]
        %v525 = vld [vmem:[%s260 + $0x98] sm:$0xff]
        %v526 = vld [vmem:[%s260 + $0xa0] sm:$0xff]
        %v527 = vld [vmem:[%s260 + $0xa8] sm:$0xff]
        %v528 = vld [vmem:[%s260 + $0xb0] sm:$0xff]
        %v529 = vld [vmem:[%s260 + $0xb8] sm:$0xff]
        %v530 = vld [vmem:[%s260 + $0xc0] sm:$0xff]
        %v531 = vld [vmem:[%s260 + $0xc8] sm:$0xff]
        %v532 = vld [vmem:[%s260 + $0xd0] sm:$0xff]
        %v533 = vld [vmem:[%s260 + $0xd8] sm:$0xff]
        %v534 = vld [vmem:[%s260 + $0xe0] sm:$0xff]
        %v535 = vld [vmem:[%s260 + $0xe8] sm:$0xff]
        %v536 = vld [vmem:[%s260 + $0xf0] sm:$0xff]
        %v537 = vld [vmem:[%s260 + $0xf8] sm:$0xff]
        %v538 = vld [vmem:[%s260 + $0x100] sm:$0xff]
        %v539 = vld [vmem:[%s260 + $0x108] sm:$0xff]
        %v540 = vld [vmem:[%s260 + $0x110] sm:$0xff]
        %v541 = vld [vmem:[%s260 + $0x118] sm:$0xff]
        %v542 = vld [vmem:[%s260 + $0x120] sm:$0xff]
        %v543 = vld [vmem:[%s260 + $0x128] sm:$0xff]
        %v544 = vld [vmem:[%s260 + $0x130] sm:$0xff]
        %v545 = vld [vmem:[%s260 + $0x138] sm:$0xff]
        %v546 = vld [vmem:[%s260 + $0x140] sm:$0xff]
        %v547 = vld [vmem:[%s260 + $0x148] sm:$0xff]
        %v548 = vld [vmem:[%s260 + $0x150] sm:$0xff]
        %v549 = vld [vmem:[%s260 + $0x158] sm:$0xff]
        %v550 = vld [vmem:[%s260 + $0x160] sm:$0xff]
        %v551 = vld [vmem:[%s260 + $0x168] sm:$0xff]
        %v552 = vld [vmem:[%s260 + $0x170] sm:$0xff]
        %v553 = vld [vmem:[%s260 + $0x178] sm:$0xff]
        %v554 = vld [vmem:[%s260 + $0x180] sm:$0xff]
        %v555 = vld [vmem:[%s260 + $0x188] sm:$0xff]
        %v556 = vld [vmem:[%s260 + $0x190] sm:$0xff]
        %v557 = vld [vmem:[%s260 + $0x198] sm:$0xff]
        %v558 = vld [vmem:[%s260 + $0x1a0] sm:$0xff]
        %v559 = vld [vmem:[%s260 + $0x1a8] sm:$0xff]
        %v560 = vld [vmem:[%s260 + $0x1b0] sm:$0xff]
        %v561 = vld [vmem:[%s260 + $0x1b8] sm:$0xff]
        %v562 = vld [vmem:[%s260 + $0x1c0] sm:$0xff]
        %v563 = vld [vmem:[%s260 + $0x1c8] sm:$0xff]
        %v564 = vld [vmem:[%s260 + $0x1d0] sm:$0xff]
        %v565 = vld [vmem:[%s260 + $0x1d8] sm:$0xff]
        %v566 = vld [vmem:[%s260 + $0x1e0] sm:$0xff]
        %v567 = vld [vmem:[%s260 + $0x1e8] sm:$0xff]
        %v568 = vld [vmem:[%s260 + $0x1f0] sm:$0xff]
        %v569 = vld [vmem:[%s260 + $0x1f8] sm:$0xff]
        %v634 = vunpack.c.l.b16 %v442
        %v635 = vunpack.c.h.b16 %v442
        %v636 = vunpack.c.l.b16 %v443
        %v637 = vunpack.c.h.b16 %v443
        %v638 = vunpack.c.l.b16 %v444
        %v639 = vunpack.c.h.b16 %v444
        %v640 = vunpack.c.l.b16 %v445
        %v641 = vunpack.c.h.b16 %v445
        %v642 = vunpack.c.l.b16 %v446
        %v643 = vunpack.c.h.b16 %v446
        %v644 = vunpack.c.l.b16 %v447
        %v645 = vunpack.c.h.b16 %v447
        %v646 = vunpack.c.l.b16 %v448
        %v647 = vunpack.c.h.b16 %v448
        %v648 = vunpack.c.l.b16 %v449
        %v649 = vunpack.c.h.b16 %v449
        %v650 = vunpack.c.l.b16 %v450
        %v651 = vunpack.c.h.b16 %v450
        %v652 = vunpack.c.l.b16 %v451
        %v653 = vunpack.c.h.b16 %v451
        %v654 = vunpack.c.l.b16 %v452
        %v655 = vunpack.c.h.b16 %v452
        %v656 = vunpack.c.l.b16 %v453
        %v657 = vunpack.c.h.b16 %v453
        %v658 = vunpack.c.l.b16 %v454
        %v659 = vunpack.c.h.b16 %v454
        %v660 = vunpack.c.l.b16 %v455
        %v661 = vunpack.c.h.b16 %v455
        %v662 = vunpack.c.l.b16 %v456
        %v663 = vunpack.c.h.b16 %v456
        %v664 = vunpack.c.l.b16 %v457
        %v665 = vunpack.c.h.b16 %v457
        %v666 = vunpack.c.l.b16 %v458
        %v667 = vunpack.c.h.b16 %v458
        %v668 = vunpack.c.l.b16 %v459
        %v669 = vunpack.c.h.b16 %v459
        %v670 = vunpack.c.l.b16 %v460
        %v671 = vunpack.c.h.b16 %v460
        %v672 = vunpack.c.l.b16 %v461
        %v673 = vunpack.c.h.b16 %v461
        %v674 = vunpack.c.l.b16 %v462
        %v675 = vunpack.c.h.b16 %v462
        %v676 = vunpack.c.l.b16 %v463
        %v677 = vunpack.c.h.b16 %v463
        %v678 = vunpack.c.l.b16 %v464
        %v679 = vunpack.c.h.b16 %v464
        %v680 = vunpack.c.l.b16 %v465
        %v681 = vunpack.c.h.b16 %v465
        %v682 = vunpack.c.l.b16 %v466
        %v683 = vunpack.c.h.b16 %v466
        %v684 = vunpack.c.l.b16 %v467
        %v685 = vunpack.c.h.b16 %v467
        %v686 = vunpack.c.l.b16 %v468
        %v687 = vunpack.c.h.b16 %v468
        %v688 = vunpack.c.l.b16 %v469
        %v689 = vunpack.c.h.b16 %v469
        %v690 = vunpack.c.l.b16 %v470
        %v691 = vunpack.c.h.b16 %v470
        %v692 = vunpack.c.l.b16 %v471
        %v693 = vunpack.c.h.b16 %v471
        %v694 = vunpack.c.l.b16 %v472
        %v695 = vunpack.c.h.b16 %v472
        %v696 = vunpack.c.l.b16 %v473
        %v697 = vunpack.c.h.b16 %v473
        %v698 = vunpack.c.l.b16 %v474
        %v699 = vunpack.c.h.b16 %v474
        %v700 = vunpack.c.l.b16 %v475
        %v701 = vunpack.c.h.b16 %v475
        %v702 = vunpack.c.l.b16 %v476
        %v703 = vunpack.c.h.b16 %v476
        %v704 = vunpack.c.l.b16 %v477
        %v705 = vunpack.c.h.b16 %v477
        %v706 = vunpack.c.l.b16 %v478
        %v707 = vunpack.c.h.b16 %v478
        %v708 = vunpack.c.l.b16 %v479
        %v709 = vunpack.c.h.b16 %v479
        %v710 = vunpack.c.l.b16 %v480
        %v711 = vunpack.c.h.b16 %v480
        %v712 = vunpack.c.l.b16 %v481
        %v713 = vunpack.c.h.b16 %v481
        %v714 = vunpack.c.l.b16 %v482
        %v715 = vunpack.c.h.b16 %v482
        %v716 = vunpack.c.l.b16 %v483
        %v717 = vunpack.c.h.b16 %v483
        %v718 = vunpack.c.l.b16 %v484
        %v719 = vunpack.c.h.b16 %v484
        %v720 = vunpack.c.l.b16 %v485
        %v721 = vunpack.c.h.b16 %v485
        %v722 = vunpack.c.l.b16 %v486
        %v723 = vunpack.c.h.b16 %v486
        %v724 = vunpack.c.l.b16 %v487
        %v725 = vunpack.c.h.b16 %v487
        %v726 = vunpack.c.l.b16 %v488
        %v727 = vunpack.c.h.b16 %v488
        %v728 = vunpack.c.l.b16 %v489
        %v729 = vunpack.c.h.b16 %v489
        %v730 = vunpack.c.l.b16 %v490
        %v731 = vunpack.c.h.b16 %v490
        %v732 = vunpack.c.l.b16 %v491
        %v733 = vunpack.c.h.b16 %v491
        %v734 = vunpack.c.l.b16 %v492
        %v735 = vunpack.c.h.b16 %v492
        %v736 = vunpack.c.l.b16 %v493
        %v737 = vunpack.c.h.b16 %v493
        %v738 = vunpack.c.l.b16 %v494
        %v739 = vunpack.c.h.b16 %v494
        %v740 = vunpack.c.l.b16 %v495
        %v741 = vunpack.c.h.b16 %v495
        %v742 = vunpack.c.l.b16 %v496
        %v743 = vunpack.c.h.b16 %v496
        %v744 = vunpack.c.l.b16 %v497
        %v745 = vunpack.c.h.b16 %v497
        %v746 = vunpack.c.l.b16 %v498
        %v747 = vunpack.c.h.b16 %v498
        %v748 = vunpack.c.l.b16 %v499
        %v749 = vunpack.c.h.b16 %v499
        %v750 = vunpack.c.l.b16 %v500
        %v751 = vunpack.c.h.b16 %v500
        %v752 = vunpack.c.l.b16 %v501
        %v753 = vunpack.c.h.b16 %v501
        %v754 = vunpack.c.l.b16 %v502
        %v755 = vunpack.c.h.b16 %v502
        %v756 = vunpack.c.l.b16 %v503
        %v757 = vunpack.c.h.b16 %v503
        %v758 = vunpack.c.l.b16 %v504
        %v759 = vunpack.c.h.b16 %v504
        %v760 = vunpack.c.l.b16 %v505
        %v761 = vunpack.c.h.b16 %v505
        %v762 = vpack.c.b16 %v638, %v634
        %v763 = vpack.c.b16 %v639, %v635
        %v764 = vpack.c.b16 %v640, %v636
        %v765 = vpack.c.b16 %v641, %v637
        %v766 = vpack.c.b16 %v646, %v642
        %v767 = vpack.c.b16 %v647, %v643
        %v768 = vpack.c.b16 %v648, %v644
        %v769 = vpack.c.b16 %v649, %v645
        %v770 = vpack.c.b16 %v654, %v650
        %v771 = vpack.c.b16 %v655, %v651
        %v772 = vpack.c.b16 %v656, %v652
        %v773 = vpack.c.b16 %v657, %v653
        %v774 = vpack.c.b16 %v662, %v658
        %v775 = vpack.c.b16 %v663, %v659
        %v776 = vpack.c.b16 %v664, %v660
        %v777 = vpack.c.b16 %v665, %v661
        %v778 = vpack.c.b16 %v670, %v666
        %v779 = vpack.c.b16 %v671, %v667
        %v780 = vpack.c.b16 %v672, %v668
        %v781 = vpack.c.b16 %v673, %v669
        %v782 = vpack.c.b16 %v678, %v674
        %v783 = vpack.c.b16 %v679, %v675
        %v784 = vpack.c.b16 %v680, %v676
        %v785 = vpack.c.b16 %v681, %v677
        %v786 = vpack.c.b16 %v686, %v682
        %v787 = vpack.c.b16 %v687, %v683
        %v788 = vpack.c.b16 %v688, %v684
        %v789 = vpack.c.b16 %v689, %v685
        %v790 = vpack.c.b16 %v694, %v690
        %v791 = vpack.c.b16 %v695, %v691
        %v792 = vpack.c.b16 %v696, %v692
        %v793 = vpack.c.b16 %v697, %v693
        %v794 = vpack.c.b16 %v702, %v698
        %v795 = vpack.c.b16 %v703, %v699
        %v796 = vpack.c.b16 %v704, %v700
        %v797 = vpack.c.b16 %v705, %v701
        %v798 = vpack.c.b16 %v710, %v706
        %v799 = vpack.c.b16 %v711, %v707
        %v800 = vpack.c.b16 %v712, %v708
        %v801 = vpack.c.b16 %v713, %v709
        %v802 = vpack.c.b16 %v718, %v714
        %v803 = vpack.c.b16 %v719, %v715
        %v804 = vpack.c.b16 %v720, %v716
        %v805 = vpack.c.b16 %v721, %v717
        %v806 = vpack.c.b16 %v726, %v722
        %v807 = vpack.c.b16 %v727, %v723
        %v808 = vpack.c.b16 %v728, %v724
        %v809 = vpack.c.b16 %v729, %v725
        %v810 = vpack.c.b16 %v734, %v730
        %v811 = vpack.c.b16 %v735, %v731
        %v812 = vpack.c.b16 %v736, %v732
        %v813 = vpack.c.b16 %v737, %v733
        %v814 = vpack.c.b16 %v742, %v738
        %v815 = vpack.c.b16 %v743, %v739
        %v816 = vpack.c.b16 %v744, %v740
        %v817 = vpack.c.b16 %v745, %v741
        %v818 = vpack.c.b16 %v750, %v746
        %v819 = vpack.c.b16 %v751, %v747
        %v820 = vpack.c.b16 %v752, %v748
        %v821 = vpack.c.b16 %v753, %v749
        %v822 = vpack.c.b16 %v758, %v754
        %v823 = vpack.c.b16 %v759, %v755
        %v824 = vpack.c.b16 %v760, %v756
        %v825 = vpack.c.b16 %v761, %v757
        %v954 = vunpack.c.l.b16 %v506
        %v955 = vunpack.c.h.b16 %v506
        %v956 = vunpack.c.l.b16 %v507
        %v957 = vunpack.c.h.b16 %v507
        %v958 = vunpack.c.l.b16 %v508
        %v959 = vunpack.c.h.b16 %v508
        %v960 = vunpack.c.l.b16 %v509
        %v961 = vunpack.c.h.b16 %v509
        %v962 = vunpack.c.l.b16 %v510
        %v963 = vunpack.c.h.b16 %v510
        %v964 = vunpack.c.l.b16 %v511
        %v965 = vunpack.c.h.b16 %v511
        %v966 = vunpack.c.l.b16 %v512
        %v967 = vunpack.c.h.b16 %v512
        %v968 = vunpack.c.l.b16 %v513
        %v969 = vunpack.c.h.b16 %v513
        %v970 = vunpack.c.l.b16 %v514
        %v971 = vunpack.c.h.b16 %v514
        %v972 = vunpack.c.l.b16 %v515
        %v973 = vunpack.c.h.b16 %v515
        %v974 = vunpack.c.l.b16 %v516
        %v975 = vunpack.c.h.b16 %v516
        %v976 = vunpack.c.l.b16 %v517
        %v977 = vunpack.c.h.b16 %v517
        %v978 = vunpack.c.l.b16 %v518
        %v979 = vunpack.c.h.b16 %v518
        %v980 = vunpack.c.l.b16 %v519
        %v981 = vunpack.c.h.b16 %v519
        %v982 = vunpack.c.l.b16 %v520
        %v983 = vunpack.c.h.b16 %v520
        %v984 = vunpack.c.l.b16 %v521
        %v985 = vunpack.c.h.b16 %v521
        %v986 = vunpack.c.l.b16 %v522
        %v987 = vunpack.c.h.b16 %v522
        %v988 = vunpack.c.l.b16 %v523
        %v989 = vunpack.c.h.b16 %v523
        %v990 = vunpack.c.l.b16 %v524
        %v991 = vunpack.c.h.b16 %v524
        %v992 = vunpack.c.l.b16 %v525
        %v993 = vunpack.c.h.b16 %v525
        %v994 = vunpack.c.l.b16 %v526
        %v995 = vunpack.c.h.b16 %v526
        %v996 = vunpack.c.l.b16 %v527
        %v997 = vunpack.c.h.b16 %v527
        %v998 = vunpack.c.l.b16 %v528
        %v999 = vunpack.c.h.b16 %v528
        %v1000 = vunpack.c.l.b16 %v529
        %v1001 = vunpack.c.h.b16 %v529
        %v1002 = vunpack.c.l.b16 %v530
        %v1003 = vunpack.c.h.b16 %v530
        %v1004 = vunpack.c.l.b16 %v531
        %v1005 = vunpack.c.h.b16 %v531
        %v1006 = vunpack.c.l.b16 %v532
        %v1007 = vunpack.c.h.b16 %v532
        %v1008 = vunpack.c.l.b16 %v533
        %v1009 = vunpack.c.h.b16 %v533
        %v1010 = vunpack.c.l.b16 %v534
        %v1011 = vunpack.c.h.b16 %v534
        %v1012 = vunpack.c.l.b16 %v535
        %v1013 = vunpack.c.h.b16 %v535
        %v1014 = vunpack.c.l.b16 %v536
        %v1015 = vunpack.c.h.b16 %v536
        %v1016 = vunpack.c.l.b16 %v537
        %v1017 = vunpack.c.h.b16 %v537
        %v1018 = vunpack.c.l.b16 %v538
        %v1019 = vunpack.c.h.b16 %v538
        %v1020 = vunpack.c.l.b16 %v539
        %v1021 = vunpack.c.h.b16 %v539
        %v1022 = vunpack.c.l.b16 %v540
        %v1023 = vunpack.c.h.b16 %v540
        %v1024 = vunpack.c.l.b16 %v541
        %v1025 = vunpack.c.h.b16 %v541
        %v1026 = vunpack.c.l.b16 %v542
        %v1027 = vunpack.c.h.b16 %v542
        %v1028 = vunpack.c.l.b16 %v543
        %v1029 = vunpack.c.h.b16 %v543
        %v1030 = vunpack.c.l.b16 %v544
        %v1031 = vunpack.c.h.b16 %v544
        %v1032 = vunpack.c.l.b16 %v545
        %v1033 = vunpack.c.h.b16 %v545
        %v1034 = vunpack.c.l.b16 %v546
        %v1035 = vunpack.c.h.b16 %v546
        %v1036 = vunpack.c.l.b16 %v547
        %v1037 = vunpack.c.h.b16 %v547
        %v1038 = vunpack.c.l.b16 %v548
        %v1039 = vunpack.c.h.b16 %v548
        %v1040 = vunpack.c.l.b16 %v549
        %v1041 = vunpack.c.h.b16 %v549
        %v1042 = vunpack.c.l.b16 %v550
        %v1043 = vunpack.c.h.b16 %v550
        %v1044 = vunpack.c.l.b16 %v551
        %v1045 = vunpack.c.h.b16 %v551
        %v1046 = vunpack.c.l.b16 %v552
        %v1047 = vunpack.c.h.b16 %v552
        %v1048 = vunpack.c.l.b16 %v553
        %v1049 = vunpack.c.h.b16 %v553
        %v1050 = vunpack.c.l.b16 %v554
        %v1051 = vunpack.c.h.b16 %v554
        %v1052 = vunpack.c.l.b16 %v555
        %v1053 = vunpack.c.h.b16 %v555
        %v1054 = vunpack.c.l.b16 %v556
        %v1055 = vunpack.c.h.b16 %v556
        %v1056 = vunpack.c.l.b16 %v557
        %v1057 = vunpack.c.h.b16 %v557
        %v1058 = vunpack.c.l.b16 %v558
        %v1059 = vunpack.c.h.b16 %v558
        %v1060 = vunpack.c.l.b16 %v559
        %v1061 = vunpack.c.h.b16 %v559
        %v1062 = vunpack.c.l.b16 %v560
        %v1063 = vunpack.c.h.b16 %v560
        %v1064 = vunpack.c.l.b16 %v561
        %v1065 = vunpack.c.h.b16 %v561
        %v1066 = vunpack.c.l.b16 %v562
        %v1067 = vunpack.c.h.b16 %v562
        %v1068 = vunpack.c.l.b16 %v563
        %v1069 = vunpack.c.h.b16 %v563
        %v1070 = vunpack.c.l.b16 %v564
        %v1071 = vunpack.c.h.b16 %v564
        %v1072 = vunpack.c.l.b16 %v565
        %v1073 = vunpack.c.h.b16 %v565
        %v1074 = vunpack.c.l.b16 %v566
        %v1075 = vunpack.c.h.b16 %v566
        %v1076 = vunpack.c.l.b16 %v567
        %v1077 = vunpack.c.h.b16 %v567
        %v1078 = vunpack.c.l.b16 %v568
        %v1079 = vunpack.c.h.b16 %v568
        %v1080 = vunpack.c.l.b16 %v569
        %v1081 = vunpack.c.h.b16 %v569
        %v1082 = vpack.c.b16 %v956, %v954
        %v1083 = vpack.c.b16 %v957, %v955
        %v1084 = vpack.c.b16 %v960, %v958
        %v1085 = vpack.c.b16 %v961, %v959
        %v1086 = vpack.c.b16 %v964, %v962
        %v1087 = vpack.c.b16 %v965, %v963
        %v1088 = vpack.c.b16 %v968, %v966
        %v1089 = vpack.c.b16 %v969, %v967
        %v1090 = vpack.c.b16 %v972, %v970
        %v1091 = vpack.c.b16 %v973, %v971
        %v1092 = vpack.c.b16 %v976, %v974
        %v1093 = vpack.c.b16 %v977, %v975
        %v1094 = vpack.c.b16 %v980, %v978
        %v1095 = vpack.c.b16 %v981, %v979
        %v1096 = vpack.c.b16 %v984, %v982
        %v1097 = vpack.c.b16 %v985, %v983
        %v1098 = vpack.c.b16 %v988, %v986
        %v1099 = vpack.c.b16 %v989, %v987
        %v1100 = vpack.c.b16 %v992, %v990
        %v1101 = vpack.c.b16 %v993, %v991
        %v1102 = vpack.c.b16 %v996, %v994
        %v1103 = vpack.c.b16 %v997, %v995
        %v1104 = vpack.c.b16 %v1000, %v998
        %v1105 = vpack.c.b16 %v1001, %v999
        %v1106 = vpack.c.b16 %v1004, %v1002
        %v1107 = vpack.c.b16 %v1005, %v1003
        %v1108 = vpack.c.b16 %v1008, %v1006
        %v1109 = vpack.c.b16 %v1009, %v1007
        %v1110 = vpack.c.b16 %v1012, %v1010
        %v1111 = vpack.c.b16 %v1013, %v1011
        %v1112 = vpack.c.b16 %v1016, %v1014
        %v1113 = vpack.c.b16 %v1017, %v1015
        %v1114 = vpack.c.b16 %v1020, %v1018
        %v1115 = vpack.c.b16 %v1021, %v1019
        %v1116 = vpack.c.b16 %v1024, %v1022
        %v1117 = vpack.c.b16 %v1025, %v1023
        %v1118 = vpack.c.b16 %v1028, %v1026
        %v1119 = vpack.c.b16 %v1029, %v1027
        %v1120 = vpack.c.b16 %v1032, %v1030
        %v1121 = vpack.c.b16 %v1033, %v1031
        %v1122 = vpack.c.b16 %v1036, %v1034
        %v1123 = vpack.c.b16 %v1037, %v1035
        %v1124 = vpack.c.b16 %v1040, %v1038
        %v1125 = vpack.c.b16 %v1041, %v1039
        %v1126 = vpack.c.b16 %v1044, %v1042
        %v1127 = vpack.c.b16 %v1045, %v1043
        %v1128 = vpack.c.b16 %v1048, %v1046
        %v1129 = vpack.c.b16 %v1049, %v1047
        %v1130 = vpack.c.b16 %v1052, %v1050
        %v1131 = vpack.c.b16 %v1053, %v1051
        %v1132 = vpack.c.b16 %v1056, %v1054
        %v1133 = vpack.c.b16 %v1057, %v1055
        %v1134 = vpack.c.b16 %v1060, %v1058
        %v1135 = vpack.c.b16 %v1061, %v1059
        %v1136 = vpack.c.b16 %v1064, %v1062
        %v1137 = vpack.c.b16 %v1065, %v1063
        %v1138 = vpack.c.b16 %v1068, %v1066
        %v1139 = vpack.c.b16 %v1069, %v1067
        %v1140 = vpack.c.b16 %v1072, %v1070
        %v1141 = vpack.c.b16 %v1073, %v1071
        %v1142 = vpack.c.b16 %v1076, %v1074
        %v1143 = vpack.c.b16 %v1077, %v1075
        %v1144 = vpack.c.b16 %v1080, %v1078
        %v1145 = vpack.c.b16 %v1081, %v1079
        %1210 = vmatprep.subr.bf16.mxu0 %v1083
        %1211 = vmatpush1.bf16.msra.mxu0 %v1082
        %1212 = vmatprep.subr.bf16.mxu0 %v1085
        %1213 = vmatpush1.bf16.msra.mxu0 %v1084
        %1214 = vmatprep.subr.bf16.mxu0 %v1087
        %1215 = vmatpush1.bf16.msra.mxu0 %v1086
        %1216 = vmatprep.subr.bf16.mxu0 %v1089
        %1217 = vmatpush1.bf16.msra.mxu0 %v1088
        %1218 = vmatprep.subr.bf16.mxu0 %v1091
        %1219 = vmatpush1.bf16.msra.mxu0 %v1090
        %1220 = vmatprep.subr.bf16.mxu0 %v1093
        %1221 = vmatpush1.bf16.msra.mxu0 %v1092
        %1222 = vmatprep.subr.bf16.mxu0 %v1095
        %1223 = vmatpush1.bf16.msra.mxu0 %v1094
        %1224 = vmatprep.subr.bf16.mxu0 %v1097
        %1225 = vmatpush1.bf16.msra.mxu0 %v1096
        %1226 = vmatprep.subr.bf16.mxu0 %v1099
        %1227 = vmatpush1.bf16.msra.mxu0 %v1098
        %1228 = vmatprep.subr.bf16.mxu0 %v1101
        %1229 = vmatpush1.bf16.msra.mxu0 %v1100
        %1230 = vmatprep.subr.bf16.mxu0 %v1103
        %1231 = vmatpush1.bf16.msra.mxu0 %v1102
        %1232 = vmatprep.subr.bf16.mxu0 %v1105
        %1233 = vmatpush1.bf16.msra.mxu0 %v1104
        %1234 = vmatprep.subr.bf16.mxu0 %v1107
        %1235 = vmatpush1.bf16.msra.mxu0 %v1106
        %1236 = vmatprep.subr.bf16.mxu0 %v1109
        %1237 = vmatpush1.bf16.msra.mxu0 %v1108
        %1238 = vmatprep.subr.bf16.mxu0 %v1111
        %1239 = vmatpush1.bf16.msra.mxu0 %v1110
        %1240 = vmatprep.subr.bf16.mxu0 %v1113
        %1241 = vmatpush1.bf16.msra.mxu0 %v1112
        %1242 = vmatprep.mubr.bf16.mxu0 %v763
        %1243 = vmatmul.mubr.bf16.gmra.mrb[0].mxu0 %v762
        %v1244 = vpop.f32.mrb[0].mxu0
        %v1245 = vadd.f32 0.0, %v1244
        %v1246 = vpop.f32.mrb[0].mxu0
        %v1247 = vadd.f32 0.0, %v1246
        %v1248 = vpop.f32.mrb[0].mxu0
        %v1249 = vadd.f32 0.0, %v1248
        %v1250 = vpop.f32.mrb[0].mxu0
        %v1251 = vadd.f32 0.0, %v1250
        %1252 = vmatprep.mubr.bf16.mxu0 %v767
        %1253 = vmatmul.mubr.bf16.gmra.mrb[0].mxu0 %v766
        %v1254 = vpop.f32.mrb[0].mxu0
        %v1255 = vadd.f32 0.0, %v1254
        %v1256 = vpop.f32.mrb[0].mxu0
        %v1257 = vadd.f32 0.0, %v1256
        %v1258 = vpop.f32.mrb[0].mxu0
        %v1259 = vadd.f32 0.0, %v1258
        %v1260 = vpop.f32.mrb[0].mxu0
        %v1261 = vadd.f32 0.0, %v1260
        %1262 = vmatprep.mubr.bf16.mxu0 %v771
        %1263 = vmatmul.mubr.bf16.gmra.mrb[0].mxu0 %v770
        %v1264 = vpop.f32.mrb[0].mxu0
        %v1265 = vadd.f32 0.0, %v1264
        %v1266 = vpop.f32.mrb[0].mxu0
        %v1267 = vadd.f32 0.0, %v1266
        %v1268 = vpop.f32.mrb[0].mxu0
        %v1269 = vadd.f32 0.0, %v1268
        %v1270 = vpop.f32.mrb[0].mxu0
        %v1271 = vadd.f32 0.0, %v1270
        %1272 = vmatprep.mubr.bf16.mxu0 %v775
        %1273 = vmatmul.mubr.bf16.gmra.mrb[0].mxu0 %v774
        %v1274 = vpop.f32.mrb[0].mxu0
        %v1275 = vadd.f32 0.0, %v1274
        %v1276 = vpop.f32.mrb[0].mxu0
        %v1277 = vadd.f32 0.0, %v1276
        %v1278 = vpop.f32.mrb[0].mxu0
        %v1279 = vadd.f32 0.0, %v1278
        %v1280 = vpop.f32.mrb[0].mxu0
        %v1281 = vadd.f32 0.0, %v1280
        %1282 = vmatprep.mubr.bf16.mxu0 %v779
        %1283 = vmatmul.mubr.bf16.gmra.mrb[0].mxu0 %v778
        %v1284 = vpop.f32.mrb[0].mxu0
        %v1285 = vadd.f32 0.0, %v1284
        %v1286 = vpop.f32.mrb[0].mxu0
        %v1287 = vadd.f32 0.0, %v1286
        %v1288 = vpop.f32.mrb[0].mxu0
        %v1289 = vadd.f32 0.0, %v1288
        %v1290 = vpop.f32.mrb[0].mxu0
        %v1291 = vadd.f32 0.0, %v1290
        %1292 = vmatprep.mubr.bf16.mxu0 %v783
        %1293 = vmatmul.mubr.bf16.gmra.mrb[0].mxu0 %v782
        %v1294 = vpop.f32.mrb[0].mxu0
        %v1295 = vadd.f32 0.0, %v1294
        %v1296 = vpop.f32.mrb[0].mxu0
        %v1297 = vadd.f32 0.0, %v1296
        %v1298 = vpop.f32.mrb[0].mxu0
        %v1299 = vadd.f32 0.0, %v1298
        %v1300 = vpop.f32.mrb[0].mxu0
        %v1301 = vadd.f32 0.0, %v1300
        %1302 = vmatprep.mubr.bf16.mxu0 %v787
        %1303 = vmatmul.mubr.bf16.gmra.mrb[0].mxu0 %v786
        %v1304 = vpop.f32.mrb[0].mxu0
        %v1305 = vadd.f32 0.0, %v1304
        %v1306 = vpop.f32.mrb[0].mxu0
        %v1307 = vadd.f32 0.0, %v1306
        %v1308 = vpop.f32.mrb[0].mxu0
        %v1309 = vadd.f32 0.0, %v1308
        %v1310 = vpop.f32.mrb[0].mxu0
        %v1311 = vadd.f32 0.0, %v1310
        %1312 = vmatprep.mubr.bf16.mxu0 %v791
        %1313 = vmatmul.mubr.bf16.gmra.mrb[0].mxu0 %v790
        %v1314 = vpop.f32.mrb[0].mxu0
        %v1315 = vadd.f32 0.0, %v1314
        %v1316 = vpop.f32.mrb[0].mxu0
        %v1317 = vadd.f32 0.0, %v1316
        %v1318 = vpop.f32.mrb[0].mxu0
        %v1319 = vadd.f32 0.0, %v1318
        %v1320 = vpop.f32.mrb[0].mxu0
        %v1321 = vadd.f32 0.0, %v1320
        %1322 = vmatprep.mubr.bf16.mxu0 %v795
        %1323 = vmatmul.mubr.bf16.gmra.mrb[0].mxu0 %v794
        %v1324 = vpop.f32.mrb[0].mxu0
        %v1325 = vadd.f32 0.0, %v1324
        %v1326 = vpop.f32.mrb[0].mxu0
        %v1327 = vadd.f32 0.0, %v1326
        %v1328 = vpop.f32.mrb[0].mxu0
        %v1329 = vadd.f32 0.0, %v1328
        %v1330 = vpop.f32.mrb[0].mxu0
        %v1331 = vadd.f32 0.0, %v1330
        %1332 = vmatprep.mubr.bf16.mxu0 %v799
        %1333 = vmatmul.mubr.bf16.gmra.mrb[0].mxu0 %v798
        %v1334 = vpop.f32.mrb[0].mxu0
        %v1335 = vadd.f32 0.0, %v1334
        %v1336 = vpop.f32.mrb[0].mxu0
        %v1337 = vadd.f32 0.0, %v1336
        %v1338 = vpop.f32.mrb[0].mxu0
        %v1339 = vadd.f32 0.0, %v1338
        %v1340 = vpop.f32.mrb[0].mxu0
        %v1341 = vadd.f32 0.0, %v1340
        %1342 = vmatprep.mubr.bf16.mxu0 %v803
        %1343 = vmatmul.mubr.bf16.gmra.mrb[0].mxu0 %v802
        %v1344 = vpop.f32.mrb[0].mxu0
        %v1345 = vadd.f32 0.0, %v1344
        %v1346 = vpop.f32.mrb[0].mxu0
        %v1347 = vadd.f32 0.0, %v1346
        %v1348 = vpop.f32.mrb[0].mxu0
        %v1349 = vadd.f32 0.0, %v1348
        %v1350 = vpop.f32.mrb[0].mxu0
        %v1351 = vadd.f32 0.0, %v1350
        %1352 = vmatprep.mubr.bf16.mxu0 %v807
        %1353 = vmatmul.mubr.bf16.gmra.mrb[0].mxu0 %v806
        %v1354 = vpop.f32.mrb[0].mxu0
        %v1355 = vadd.f32 0.0, %v1354
        %v1356 = vpop.f32.mrb[0].mxu0
        %v1357 = vadd.f32 0.0, %v1356
        %v1358 = vpop.f32.mrb[0].mxu0
        %v1359 = vadd.f32 0.0, %v1358
        %v1360 = vpop.f32.mrb[0].mxu0
        %v1361 = vadd.f32 0.0, %v1360
        %1362 = vmatprep.mubr.bf16.mxu0 %v811
        %1363 = vmatmul.mubr.bf16.gmra.mrb[0].mxu0 %v810
        %v1364 = vpop.f32.mrb[0].mxu0
        %v1365 = vadd.f32 0.0, %v1364
        %v1366 = vpop.f32.mrb[0].mxu0
        %v1367 = vadd.f32 0.0, %v1366
        %v1368 = vpop.f32.mrb[0].mxu0
        %v1369 = vadd.f32 0.0, %v1368
        %v1370 = vpop.f32.mrb[0].mxu0
        %v1371 = vadd.f32 0.0, %v1370
        %1372 = vmatprep.mubr.bf16.mxu0 %v815
        %1373 = vmatmul.mubr.bf16.gmra.mrb[0].mxu0 %v814
        %v1374 = vpop.f32.mrb[0].mxu0
        %v1375 = vadd.f32 0.0, %v1374
        %v1376 = vpop.f32.mrb[0].mxu0
        %v1377 = vadd.f32 0.0, %v1376
        %v1378 = vpop.f32.mrb[0].mxu0
        %v1379 = vadd.f32 0.0, %v1378
        %v1380 = vpop.f32.mrb[0].mxu0
        %v1381 = vadd.f32 0.0, %v1380
        %1382 = vmatprep.mubr.bf16.mxu0 %v819
        %1383 = vmatmul.mubr.bf16.gmra.mrb[0].mxu0 %v818
        %v1384 = vpop.f32.mrb[0].mxu0
        %v1385 = vadd.f32 0.0, %v1384
        %v1386 = vpop.f32.mrb[0].mxu0
        %v1387 = vadd.f32 0.0, %v1386
        %v1388 = vpop.f32.mrb[0].mxu0
        %v1389 = vadd.f32 0.0, %v1388
        %v1390 = vpop.f32.mrb[0].mxu0
        %v1391 = vadd.f32 0.0, %v1390
        %1392 = vmatprep.mubr.bf16.mxu0 %v823
        %1393 = vmatmul.mubr.bf16.gmra.mrb[0].mxu0 %v822
        %v1394 = vpop.f32.mrb[0].mxu0
        %v1395 = vadd.f32 0.0, %v1394
        %v1396 = vpop.f32.mrb[0].mxu0
        %v1397 = vadd.f32 0.0, %v1396
        %v1398 = vpop.f32.mrb[0].mxu0
        %v1399 = vadd.f32 0.0, %v1398
        %v1400 = vpop.f32.mrb[0].mxu0
        %v1401 = vadd.f32 0.0, %v1400
        %1402 = vdwg.mxu0
        %1403 = vmatprep.subr.bf16.mxu0 %v1115
        %1404 = vmatpush1.bf16.msra.mxu0 %v1114
        %1405 = vmatprep.subr.bf16.mxu0 %v1117
        %1406 = vmatpush1.bf16.msra.mxu0 %v1116
        %1407 = vmatprep.subr.bf16.mxu0 %v1119
        %1408 = vmatpush1.bf16.msra.mxu0 %v1118
        %1409 = vmatprep.subr.bf16.mxu0 %v1121
        %1410 = vmatpush1.bf16.msra.mxu0 %v1120
        %1411 = vmatprep.subr.bf16.mxu0 %v1123
        %1412 = vmatpush1.bf16.msra.mxu0 %v1122
        %1413 = vmatprep.subr.bf16.mxu0 %v1125
        %1414 = vmatpush1.bf16.msra.mxu0 %v1124
        %1415 = vmatprep.subr.bf16.mxu0 %v1127
        %1416 = vmatpush1.bf16.msra.mxu0 %v1126
        %1417 = vmatprep.subr.bf16.mxu0 %v1129
        %1418 = vmatpush1.bf16.msra.mxu0 %v1128
        %1419 = vmatprep.subr.bf16.mxu0 %v1131
        %1420 = vmatpush1.bf16.msra.mxu0 %v1130
        %1421 = vmatprep.subr.bf16.mxu0 %v1133
        %1422 = vmatpush1.bf16.msra.mxu0 %v1132
        %1423 = vmatprep.subr.bf16.mxu0 %v1135
        %1424 = vmatpush1.bf16.msra.mxu0 %v1134
        %1425 = vmatprep.subr.bf16.mxu0 %v1137
        %1426 = vmatpush1.bf16.msra.mxu0 %v1136
        %1427 = vmatprep.subr.bf16.mxu0 %v1139
        %1428 = vmatpush1.bf16.msra.mxu0 %v1138
        %1429 = vmatprep.subr.bf16.mxu0 %v1141
        %1430 = vmatpush1.bf16.msra.mxu0 %v1140
        %1431 = vmatprep.subr.bf16.mxu0 %v1143
        %1432 = vmatpush1.bf16.msra.mxu0 %v1142
        %1433 = vmatprep.subr.bf16.mxu0 %v1145
        %1434 = vmatpush1.bf16.msra.mxu0 %v1144
        %1435 = vmatprep.mubr.bf16.mxu0 %v765
        %1436 = vmatmul.mubr.bf16.gmra.mrb[0].mxu0 %v764
        %v1437 = vpop.f32.mrb[0].mxu0
        %v1438 = vadd.f32 %v1245, %v1437
        %v1439 = vpop.f32.mrb[0].mxu0
        %v1440 = vadd.f32 %v1247, %v1439
        %v1441 = vpop.f32.mrb[0].mxu0
        %v1442 = vadd.f32 %v1249, %v1441
        %v1443 = vpop.f32.mrb[0].mxu0
        %v1444 = vadd.f32 %v1251, %v1443
        %1445 = vmatprep.mubr.bf16.mxu0 %v769
        %1446 = vmatmul.mubr.bf16.gmra.mrb[0].mxu0 %v768
        %v1447 = vpop.f32.mrb[0].mxu0
        %v1448 = vadd.f32 %v1255, %v1447
        %v1449 = vpop.f32.mrb[0].mxu0
        %v1450 = vadd.f32 %v1257, %v1449
        %v1451 = vpop.f32.mrb[0].mxu0
        %v1452 = vadd.f32 %v1259, %v1451
        %v1453 = vpop.f32.mrb[0].mxu0
        %v1454 = vadd.f32 %v1261, %v1453
        %1455 = vmatprep.mubr.bf16.mxu0 %v773
        %1456 = vmatmul.mubr.bf16.gmra.mrb[0].mxu0 %v772
        %v1457 = vpop.f32.mrb[0].mxu0
        %v1458 = vadd.f32 %v1265, %v1457
        %v1459 = vpop.f32.mrb[0].mxu0
        %v1460 = vadd.f32 %v1267, %v1459
        %v1461 = vpop.f32.mrb[0].mxu0
        %v1462 = vadd.f32 %v1269, %v1461
        %v1463 = vpop.f32.mrb[0].mxu0
        %v1464 = vadd.f32 %v1271, %v1463
        %1465 = vmatprep.mubr.bf16.mxu0 %v777
        %1466 = vmatmul.mubr.bf16.gmra.mrb[0].mxu0 %v776
        %v1467 = vpop.f32.mrb[0].mxu0
        %v1468 = vadd.f32 %v1275, %v1467
        %v1469 = vpop.f32.mrb[0].mxu0
        %v1470 = vadd.f32 %v1277, %v1469
        %v1471 = vpop.f32.mrb[0].mxu0
        %v1472 = vadd.f32 %v1279, %v1471
        %v1473 = vpop.f32.mrb[0].mxu0
        %v1474 = vadd.f32 %v1281, %v1473
        %1475 = vmatprep.mubr.bf16.mxu0 %v781
        %1476 = vmatmul.mubr.bf16.gmra.mrb[0].mxu0 %v780
        %v1477 = vpop.f32.mrb[0].mxu0
        %v1478 = vadd.f32 %v1285, %v1477
        %v1479 = vpop.f32.mrb[0].mxu0
        %v1480 = vadd.f32 %v1287, %v1479
        %v1481 = vpop.f32.mrb[0].mxu0
        %v1482 = vadd.f32 %v1289, %v1481
        %v1483 = vpop.f32.mrb[0].mxu0
        %v1484 = vadd.f32 %v1291, %v1483
        %1485 = vmatprep.mubr.bf16.mxu0 %v785
        %1486 = vmatmul.mubr.bf16.gmra.mrb[0].mxu0 %v784
        %v1487 = vpop.f32.mrb[0].mxu0
        %v1488 = vadd.f32 %v1295, %v1487
        %v1489 = vpop.f32.mrb[0].mxu0
        %v1490 = vadd.f32 %v1297, %v1489
        %v1491 = vpop.f32.mrb[0].mxu0
        %v1492 = vadd.f32 %v1299, %v1491
        %v1493 = vpop.f32.mrb[0].mxu0
        %v1494 = vadd.f32 %v1301, %v1493
        %1495 = vmatprep.mubr.bf16.mxu0 %v789
        %1496 = vmatmul.mubr.bf16.gmra.mrb[0].mxu0 %v788
        %v1497 = vpop.f32.mrb[0].mxu0
        %v1498 = vadd.f32 %v1305, %v1497
        %v1499 = vpop.f32.mrb[0].mxu0
        %v1500 = vadd.f32 %v1307, %v1499
        %v1501 = vpop.f32.mrb[0].mxu0
        %v1502 = vadd.f32 %v1309, %v1501
        %v1503 = vpop.f32.mrb[0].mxu0
        %v1504 = vadd.f32 %v1311, %v1503
        %1505 = vmatprep.mubr.bf16.mxu0 %v793
        %1506 = vmatmul.mubr.bf16.gmra.mrb[0].mxu0 %v792
        %v1507 = vpop.f32.mrb[0].mxu0
        %v1508 = vadd.f32 %v1315, %v1507
        %v1509 = vpop.f32.mrb[0].mxu0
        %v1510 = vadd.f32 %v1317, %v1509
        %v1511 = vpop.f32.mrb[0].mxu0
        %v1512 = vadd.f32 %v1319, %v1511
        %v1513 = vpop.f32.mrb[0].mxu0
        %v1514 = vadd.f32 %v1321, %v1513
        %1515 = vmatprep.mubr.bf16.mxu0 %v797
        %1516 = vmatmul.mubr.bf16.gmra.mrb[0].mxu0 %v796
        %v1517 = vpop.f32.mrb[0].mxu0
        %v1518 = vadd.f32 %v1325, %v1517
        %v1519 = vpop.f32.mrb[0].mxu0
        %v1520 = vadd.f32 %v1327, %v1519
        %v1521 = vpop.f32.mrb[0].mxu0
        %v1522 = vadd.f32 %v1329, %v1521
        %v1523 = vpop.f32.mrb[0].mxu0
        %v1524 = vadd.f32 %v1331, %v1523
        %1525 = vmatprep.mubr.bf16.mxu0 %v801
        %1526 = vmatmul.mubr.bf16.gmra.mrb[0].mxu0 %v800
        %v1527 = vpop.f32.mrb[0].mxu0
        %v1528 = vadd.f32 %v1335, %v1527
        %v1529 = vpop.f32.mrb[0].mxu0
        %v1530 = vadd.f32 %v1337, %v1529
        %v1531 = vpop.f32.mrb[0].mxu0
        %v1532 = vadd.f32 %v1339, %v1531
        %v1533 = vpop.f32.mrb[0].mxu0
        %v1534 = vadd.f32 %v1341, %v1533
        %1535 = vmatprep.mubr.bf16.mxu0 %v805
        %1536 = vmatmul.mubr.bf16.gmra.mrb[0].mxu0 %v804
        %v1537 = vpop.f32.mrb[0].mxu0
        %v1538 = vadd.f32 %v1345, %v1537
        %v1539 = vpop.f32.mrb[0].mxu0
        %v1540 = vadd.f32 %v1347, %v1539
        %v1541 = vpop.f32.mrb[0].mxu0
        %v1542 = vadd.f32 %v1349, %v1541
        %v1543 = vpop.f32.mrb[0].mxu0
        %v1544 = vadd.f32 %v1351, %v1543
        %1545 = vmatprep.mubr.bf16.mxu0 %v809
        %1546 = vmatmul.mubr.bf16.gmra.mrb[0].mxu0 %v808
        %v1547 = vpop.f32.mrb[0].mxu0
        %v1548 = vadd.f32 %v1355, %v1547
        %v1549 = vpop.f32.mrb[0].mxu0
        %v1550 = vadd.f32 %v1357, %v1549
        %v1551 = vpop.f32.mrb[0].mxu0
        %v1552 = vadd.f32 %v1359, %v1551
        %v1553 = vpop.f32.mrb[0].mxu0
        %v1554 = vadd.f32 %v1361, %v1553
        %1555 = vmatprep.mubr.bf16.mxu0 %v813
        %1556 = vmatmul.mubr.bf16.gmra.mrb[0].mxu0 %v812
        %v1557 = vpop.f32.mrb[0].mxu0
        %v1558 = vadd.f32 %v1365, %v1557
        %v1559 = vpop.f32.mrb[0].mxu0
        %v1560 = vadd.f32 %v1367, %v1559
        %v1561 = vpop.f32.mrb[0].mxu0
        %v1562 = vadd.f32 %v1369, %v1561
        %v1563 = vpop.f32.mrb[0].mxu0
        %v1564 = vadd.f32 %v1371, %v1563
        %1565 = vmatprep.mubr.bf16.mxu0 %v817
        %1566 = vmatmul.mubr.bf16.gmra.mrb[0].mxu0 %v816
        %v1567 = vpop.f32.mrb[0].mxu0
        %v1568 = vadd.f32 %v1375, %v1567
        %v1569 = vpop.f32.mrb[0].mxu0
        %v1570 = vadd.f32 %v1377, %v1569
        %v1571 = vpop.f32.mrb[0].mxu0
        %v1572 = vadd.f32 %v1379, %v1571
        %v1573 = vpop.f32.mrb[0].mxu0
        %v1574 = vadd.f32 %v1381, %v1573
        %1575 = vmatprep.mubr.bf16.mxu0 %v821
        %1576 = vmatmul.mubr.bf16.gmra.mrb[0].mxu0 %v820
        %v1577 = vpop.f32.mrb[0].mxu0
        %v1578 = vadd.f32 %v1385, %v1577
        %v1579 = vpop.f32.mrb[0].mxu0
        %v1580 = vadd.f32 %v1387, %v1579
        %v1581 = vpop.f32.mrb[0].mxu0
        %v1582 = vadd.f32 %v1389, %v1581
        %v1583 = vpop.f32.mrb[0].mxu0
        %v1584 = vadd.f32 %v1391, %v1583
        %1585 = vmatprep.mubr.bf16.mxu0 %v825
        %1586 = vmatmul.mubr.bf16.gmra.mrb[0].mxu0 %v824
        %v1587 = vpop.f32.mrb[0].mxu0
        %v1588 = vadd.f32 %v1395, %v1587
        %v1589 = vpop.f32.mrb[0].mxu0
        %v1590 = vadd.f32 %v1397, %v1589
        %v1591 = vpop.f32.mrb[0].mxu0
        %v1592 = vadd.f32 %v1399, %v1591
        %v1593 = vpop.f32.mrb[0].mxu0
        %v1594 = vadd.f32 %v1401, %v1593
        %1595 = vdwg.mxu0
        %v1596 = vadd.f32 %v378, %v1438
        %v1597 = vadd.f32 %v379, %v1440
        %v1598 = vadd.f32 %v380, %v1442
        %v1599 = vadd.f32 %v381, %v1444
        %v1600 = vadd.f32 %v382, %v1448
        %v1601 = vadd.f32 %v383, %v1450
        %v1602 = vadd.f32 %v384, %v1452
        %v1603 = vadd.f32 %v385, %v1454
        %v1604 = vadd.f32 %v386, %v1458
        %v1605 = vadd.f32 %v387, %v1460
        %v1606 = vadd.f32 %v388, %v1462
        %v1607 = vadd.f32 %v389, %v1464
        %v1608 = vadd.f32 %v390, %v1468
        %v1609 = vadd.f32 %v391, %v1470
        %v1610 = vadd.f32 %v392, %v1472
        %v1611 = vadd.f32 %v393, %v1474
        %v1612 = vadd.f32 %v394, %v1478
        %v1613 = vadd.f32 %v395, %v1480
        %v1614 = vadd.f32 %v396, %v1482
        %v1615 = vadd.f32 %v397, %v1484
        %v1616 = vadd.f32 %v398, %v1488
        %v1617 = vadd.f32 %v399, %v1490
        %v1618 = vadd.f32 %v400, %v1492
        %v1619 = vadd.f32 %v401, %v1494
        %v1620 = vadd.f32 %v402, %v1498
        %v1621 = vadd.f32 %v403, %v1500
        %v1622 = vadd.f32 %v404, %v1502
        %v1623 = vadd.f32 %v405, %v1504
        %v1624 = vadd.f32 %v406, %v1508
        %v1625 = vadd.f32 %v407, %v1510
        %v1626 = vadd.f32 %v408, %v1512
        %v1627 = vadd.f32 %v409, %v1514
        %v1628 = vadd.f32 %v410, %v1518
        %v1629 = vadd.f32 %v411, %v1520
        %v1630 = vadd.f32 %v412, %v1522
        %v1631 = vadd.f32 %v413, %v1524
        %v1632 = vadd.f32 %v414, %v1528
        %v1633 = vadd.f32 %v415, %v1530
        %v1634 = vadd.f32 %v416, %v1532
        %v1635 = vadd.f32 %v417, %v1534
        %v1636 = vadd.f32 %v418, %v1538
        %v1637 = vadd.f32 %v419, %v1540
        %v1638 = vadd.f32 %v420, %v1542
        %v1639 = vadd.f32 %v421, %v1544
        %v1640 = vadd.f32 %v422, %v1548
        %v1641 = vadd.f32 %v423, %v1550
        %v1642 = vadd.f32 %v424, %v1552
        %v1643 = vadd.f32 %v425, %v1554
        %v1644 = vadd.f32 %v426, %v1558
        %v1645 = vadd.f32 %v427, %v1560
        %v1646 = vadd.f32 %v428, %v1562
        %v1647 = vadd.f32 %v429, %v1564
        %v1648 = vadd.f32 %v430, %v1568
        %v1649 = vadd.f32 %v431, %v1570
        %v1650 = vadd.f32 %v432, %v1572
        %v1651 = vadd.f32 %v433, %v1574
        %v1652 = vadd.f32 %v434, %v1578
        %v1653 = vadd.f32 %v435, %v1580
        %v1654 = vadd.f32 %v436, %v1582
        %v1655 = vadd.f32 %v437, %v1584
        %v1656 = vadd.f32 %v438, %v1588
        %v1657 = vadd.f32 %v439, %v1590
        %v1658 = vadd.f32 %v440, %v1592
        %v1659 = vadd.f32 %v441, %v1594
        %1660 = vst [vmem:[#allocation2] sm:$0xff] %v1596
        %1661 = vst [vmem:[#allocation2 + $0x8] sm:$0xff] %v1597
        %1662 = vst [vmem:[#allocation2 + $0x10] sm:$0xff] %v1598
        %1663 = vst [vmem:[#allocation2 + $0x18] sm:$0xff] %v1599
        %1664 = vst [vmem:[#allocation2 + $0x20] sm:$0xff] %v1600
        %1665 = vst [vmem:[#allocation2 + $0x28] sm:$0xff] %v1601
        %1666 = vst [vmem:[#allocation2 + $0x30] sm:$0xff] %v1602
        %1667 = vst [vmem:[#allocation2 + $0x38] sm:$0xff] %v1603
        %1668 = vst [vmem:[#allocation2 + $0x40] sm:$0xff] %v1604
        %1669 = vst [vmem:[#allocation2 + $0x48] sm:$0xff] %v1605
        %1670 = vst [vmem:[#allocation2 + $0x50] sm:$0xff] %v1606
        %1671 = vst [vmem:[#allocation2 + $0x58] sm:$0xff] %v1607
        %1672 = vst [vmem:[#allocation2 + $0x60] sm:$0xff] %v1608
        %1673 = vst [vmem:[#allocation2 + $0x68] sm:$0xff] %v1609
        %1674 = vst [vmem:[#allocation2 + $0x70] sm:$0xff] %v1610
        %1675 = vst [vmem:[#allocation2 + $0x78] sm:$0xff] %v1611
        %1676 = vst [vmem:[#allocation2 + $0x80] sm:$0xff] %v1612
        %1677 = vst [vmem:[#allocation2 + $0x88] sm:$0xff] %v1613
        %1678 = vst [vmem:[#allocation2 + $0x90] sm:$0xff] %v1614
        %1679 = vst [vmem:[#allocation2 + $0x98] sm:$0xff] %v1615
        %1680 = vst [vmem:[#allocation2 + $0xa0] sm:$0xff] %v1616
        %1681 = vst [vmem:[#allocation2 + $0xa8] sm:$0xff] %v1617
        %1682 = vst [vmem:[#allocation2 + $0xb0] sm:$0xff] %v1618
        %1683 = vst [vmem:[#allocation2 + $0xb8] sm:$0xff] %v1619
        %1684 = vst [vmem:[#allocation2 + $0xc0] sm:$0xff] %v1620
        %1685 = vst [vmem:[#allocation2 + $0xc8] sm:$0xff] %v1621
        %1686 = vst [vmem:[#allocation2 + $0xd0] sm:$0xff] %v1622
        %1687 = vst [vmem:[#allocation2 + $0xd8] sm:$0xff] %v1623
        %1688 = vst [vmem:[#allocation2 + $0xe0] sm:$0xff] %v1624
        %1689 = vst [vmem:[#allocation2 + $0xe8] sm:$0xff] %v1625
        %1690 = vst [vmem:[#allocation2 + $0xf0] sm:$0xff] %v1626
        %1691 = vst [vmem:[#allocation2 + $0xf8] sm:$0xff] %v1627
        %1692 = vst [vmem:[#allocation2 + $0x100] sm:$0xff] %v1628
        %1693 = vst [vmem:[#allocation2 + $0x108] sm:$0xff] %v1629
        %1694 = vst [vmem:[#allocation2 + $0x110] sm:$0xff] %v1630
        %1695 = vst [vmem:[#allocation2 + $0x118] sm:$0xff] %v1631
        %1696 = vst [vmem:[#allocation2 + $0x120] sm:$0xff] %v1632
        %1697 = vst [vmem:[#allocation2 + $0x128] sm:$0xff] %v1633
        %1698 = vst [vmem:[#allocation2 + $0x130] sm:$0xff] %v1634
        %1699 = vst [vmem:[#allocation2 + $0x138] sm:$0xff] %v1635
        %1700 = vst [vmem:[#allocation2 + $0x140] sm:$0xff] %v1636
        %1701 = vst [vmem:[#allocation2 + $0x148] sm:$0xff] %v1637
        %1702 = vst [vmem:[#allocation2 + $0x150] sm:$0xff] %v1638
        %1703 = vst [vmem:[#allocation2 + $0x158] sm:$0xff] %v1639
        %1704 = vst [vmem:[#allocation2 + $0x160] sm:$0xff] %v1640
        %1705 = vst [vmem:[#allocation2 + $0x168] sm:$0xff] %v1641
        %1706 = vst [vmem:[#allocation2 + $0x170] sm:$0xff] %v1642
        %1707 = vst [vmem:[#allocation2 + $0x178] sm:$0xff] %v1643
        %1708 = vst [vmem:[#allocation2 + $0x180] sm:$0xff] %v1644
        %1709 = vst [vmem:[#allocation2 + $0x188] sm:$0xff] %v1645
        %1710 = vst [vmem:[#allocation2 + $0x190] sm:$0xff] %v1646
        %1711 = vst [vmem:[#allocation2 + $0x198] sm:$0xff] %v1647
        %1712 = vst [vmem:[#allocation2 + $0x1a0] sm:$0xff] %v1648
        %1713 = vst [vmem:[#allocation2 + $0x1a8] sm:$0xff] %v1649
        %1714 = vst [vmem:[#allocation2 + $0x1b0] sm:$0xff] %v1650
        %1715 = vst [vmem:[#allocation2 + $0x1b8] sm:$0xff] %v1651
        %1716 = vst [vmem:[#allocation2 + $0x1c0] sm:$0xff] %v1652
        %1717 = vst [vmem:[#allocation2 + $0x1c8] sm:$0xff] %v1653
        %1718 = vst [vmem:[#allocation2 + $0x1d0] sm:$0xff] %v1654
        %1719 = vst [vmem:[#allocation2 + $0x1d8] sm:$0xff] %v1655
        %1720 = vst [vmem:[#allocation2 + $0x1e0] sm:$0xff] %v1656
        %1721 = vst [vmem:[#allocation2 + $0x1e8] sm:$0xff] %v1657
        %1722 = vst [vmem:[#allocation2 + $0x1f0] sm:$0xff] %v1658
        %1723 = vst [vmem:[#allocation2 + $0x1f8] sm:$0xff] %v1659
        // Predicated region
        $region49: #{tpu_custom_call.1} parent=31 // pred_check
          %p1724 = pneg %p310
        $region50: #{tpu_custom_call.1} parent=31 // pred_check_branch
          %1726 = sbr.rel (%p1724) target = $region52
        $region51: #{tpu_custom_call.1} parent=31 // pred_region
          %v1727 = vld [vmem:[#allocation2] sm:$0xff]
          %v1728 = vld [vmem:[#allocation2 + $0x8] sm:$0xff]
          %v1729 = vld [vmem:[#allocation2 + $0x10] sm:$0xff]
          %v1730 = vld [vmem:[#allocation2 + $0x18] sm:$0xff]
          %v1731 = vld [vmem:[#allocation2 + $0x20] sm:$0xff]
          %v1732 = vld [vmem:[#allocation2 + $0x28] sm:$0xff]
          %v1733 = vld [vmem:[#allocation2 + $0x30] sm:$0xff]
          %v1734 = vld [vmem:[#allocation2 + $0x38] sm:$0xff]
          %v1735 = vld [vmem:[#allocation2 + $0x40] sm:$0xff]
          %v1736 = vld [vmem:[#allocation2 + $0x48] sm:$0xff]
          %v1737 = vld [vmem:[#allocation2 + $0x50] sm:$0xff]
          %v1738 = vld [vmem:[#allocation2 + $0x58] sm:$0xff]
          %v1739 = vld [vmem:[#allocation2 + $0x60] sm:$0xff]
          %v1740 = vld [vmem:[#allocation2 + $0x68] sm:$0xff]
          %v1741 = vld [vmem:[#allocation2 + $0x70] sm:$0xff]
          %v1742 = vld [vmem:[#allocation2 + $0x78] sm:$0xff]
          %v1743 = vld [vmem:[#allocation2 + $0x80] sm:$0xff]
          %v1744 = vld [vmem:[#allocation2 + $0x88] sm:$0xff]
          %v1745 = vld [vmem:[#allocation2 + $0x90] sm:$0xff]
          %v1746 = vld [vmem:[#allocation2 + $0x98] sm:$0xff]
          %v1747 = vld [vmem:[#allocation2 + $0xa0] sm:$0xff]
          %v1748 = vld [vmem:[#allocation2 + $0xa8] sm:$0xff]
          %v1749 = vld [vmem:[#allocation2 + $0xb0] sm:$0xff]
          %v1750 = vld [vmem:[#allocation2 + $0xb8] sm:$0xff]
          %v1751 = vld [vmem:[#allocation2 + $0xc0] sm:$0xff]
          %v1752 = vld [vmem:[#allocation2 + $0xc8] sm:$0xff]
          %v1753 = vld [vmem:[#allocation2 + $0xd0] sm:$0xff]
          %v1754 = vld [vmem:[#allocation2 + $0xd8] sm:$0xff]
          %v1755 = vld [vmem:[#allocation2 + $0xe0] sm:$0xff]
          %v1756 = vld [vmem:[#allocation2 + $0xe8] sm:$0xff]
          %v1757 = vld [vmem:[#allocation2 + $0xf0] sm:$0xff]
          %v1758 = vld [vmem:[#allocation2 + $0xf8] sm:$0xff]
          %v1759 = vld [vmem:[#allocation2 + $0x100] sm:$0xff]
          %v1760 = vld [vmem:[#allocation2 + $0x108] sm:$0xff]
          %v1761 = vld [vmem:[#allocation2 + $0x110] sm:$0xff]
          %v1762 = vld [vmem:[#allocation2 + $0x118] sm:$0xff]
          %v1763 = vld [vmem:[#allocation2 + $0x120] sm:$0xff]
          %v1764 = vld [vmem:[#allocation2 + $0x128] sm:$0xff]
          %v1765 = vld [vmem:[#allocation2 + $0x130] sm:$0xff]
          %v1766 = vld [vmem:[#allocation2 + $0x138] sm:$0xff]
          %v1767 = vld [vmem:[#allocation2 + $0x140] sm:$0xff]
          %v1768 = vld [vmem:[#allocation2 + $0x148] sm:$0xff]
          %v1769 = vld [vmem:[#allocation2 + $0x150] sm:$0xff]
          %v1770 = vld [vmem:[#allocation2 + $0x158] sm:$0xff]
          %v1771 = vld [vmem:[#allocation2 + $0x160] sm:$0xff]
          %v1772 = vld [vmem:[#allocation2 + $0x168] sm:$0xff]
          %v1773 = vld [vmem:[#allocation2 + $0x170] sm:$0xff]
          %v1774 = vld [vmem:[#allocation2 + $0x178] sm:$0xff]
          %v1775 = vld [vmem:[#allocation2 + $0x180] sm:$0xff]
          %v1776 = vld [vmem:[#allocation2 + $0x188] sm:$0xff]
          %v1777 = vld [vmem:[#allocation2 + $0x190] sm:$0xff]
          %v1778 = vld [vmem:[#allocation2 + $0x198] sm:$0xff]
          %v1779 = vld [vmem:[#allocation2 + $0x1a0] sm:$0xff]
          %v1780 = vld [vmem:[#allocation2 + $0x1a8] sm:$0xff]
          %v1781 = vld [vmem:[#allocation2 + $0x1b0] sm:$0xff]
          %v1782 = vld [vmem:[#allocation2 + $0x1b8] sm:$0xff]
          %v1783 = vld [vmem:[#allocation2 + $0x1c0] sm:$0xff]
          %v1784 = vld [vmem:[#allocation2 + $0x1c8] sm:$0xff]
          %v1785 = vld [vmem:[#allocation2 + $0x1d0] sm:$0xff]
          %v1786 = vld [vmem:[#allocation2 + $0x1d8] sm:$0xff]
          %v1787 = vld [vmem:[#allocation2 + $0x1e0] sm:$0xff]
          %v1788 = vld [vmem:[#allocation2 + $0x1e8] sm:$0xff]
          %v1789 = vld [vmem:[#allocation2 + $0x1f0] sm:$0xff]
          %v1790 = vld [vmem:[#allocation2 + $0x1f8] sm:$0xff]
          %v1791 = vmul.f32 %v1727, -0.5
          %v1792 = vmul.f32 %v1728, -0.5
          %v1793 = vmul.f32 %v1729, -0.5
          %v1794 = vmul.f32 %v1730, -0.5
          %v1795 = vmul.f32 %v1731, -0.5
          %v1796 = vmul.f32 %v1732, -0.5
          %v1797 = vmul.f32 %v1733, -0.5
          %v1798 = vmul.f32 %v1734, -0.5
          %v1799 = vmul.f32 %v1735, -0.5
          %v1800 = vmul.f32 %v1736, -0.5
          %v1801 = vmul.f32 %v1737, -0.5
          %v1802 = vmul.f32 %v1738, -0.5
          %v1803 = vmul.f32 %v1739, -0.5
          %v1804 = vmul.f32 %v1740, -0.5
          %v1805 = vmul.f32 %v1741, -0.5
          %v1806 = vmul.f32 %v1742, -0.5
          %v1807 = vmul.f32 %v1743, -0.5
          %v1808 = vmul.f32 %v1744, -0.5
          %v1809 = vmul.f32 %v1745, -0.5
          %v1810 = vmul.f32 %v1746, -0.5
          %v1811 = vmul.f32 %v1747, -0.5
          %v1812 = vmul.f32 %v1748, -0.5
          %v1813 = vmul.f32 %v1749, -0.5
          %v1814 = vmul.f32 %v1750, -0.5
          %v1815 = vmul.f32 %v1751, -0.5
          %v1816 = vmul.f32 %v1752, -0.5
          %v1817 = vmul.f32 %v1753, -0.5
          %v1818 = vmul.f32 %v1754, -0.5
          %v1819 = vmul.f32 %v1755, -0.5
          %v1820 = vmul.f32 %v1756, -0.5
          %v1821 = vmul.f32 %v1757, -0.5
          %v1822 = vmul.f32 %v1758, -0.5
          %v1823 = vmul.f32 %v1759, -0.5
          %v1824 = vmul.f32 %v1760, -0.5
          %v1825 = vmul.f32 %v1761, -0.5
          %v1826 = vmul.f32 %v1762, -0.5
          %v1827 = vmul.f32 %v1763, -0.5
          %v1828 = vmul.f32 %v1764, -0.5
          %v1829 = vmul.f32 %v1765, -0.5
          %v1830 = vmul.f32 %v1766, -0.5
          %v1831 = vmul.f32 %v1767, -0.5
          %v1832 = vmul.f32 %v1768, -0.5
          %v1833 = vmul.f32 %v1769, -0.5
          %v1834 = vmul.f32 %v1770, -0.5
          %v1835 = vmul.f32 %v1771, -0.5
          %v1836 = vmul.f32 %v1772, -0.5
          %v1837 = vmul.f32 %v1773, -0.5
          %v1838 = vmul.f32 %v1774, -0.5
          %v1839 = vmul.f32 %v1775, -0.5
          %v1840 = vmul.f32 %v1776, -0.5
          %v1841 = vmul.f32 %v1777, -0.5
          %v1842 = vmul.f32 %v1778, -0.5
          %v1843 = vmul.f32 %v1779, -0.5
          %v1844 = vmul.f32 %v1780, -0.5
          %v1845 = vmul.f32 %v1781, -0.5
          %v1846 = vmul.f32 %v1782, -0.5
          %v1847 = vmul.f32 %v1783, -0.5
          %v1848 = vmul.f32 %v1784, -0.5
          %v1849 = vmul.f32 %v1785, -0.5
          %v1850 = vmul.f32 %v1786, -0.5
          %v1851 = vmul.f32 %v1787, -0.5
          %v1852 = vmul.f32 %v1788, -0.5
          %v1853 = vmul.f32 %v1789, -0.5
          %v1854 = vmul.f32 %v1790, -0.5
          %v1855 = vld [vmem:[%s269] sm:$0xff]
          %v1856 = vld [vmem:[%s269 + $0x8] sm:$0xff]
          %v1857 = vld [vmem:[%s269 + $0x10] sm:$0xff]
          %v1858 = vld [vmem:[%s269 + $0x18] sm:$0xff]
          %v1859 = vld [vmem:[%s269 + $0x20] sm:$0xff]
          %v1860 = vld [vmem:[%s269 + $0x28] sm:$0xff]
          %v1861 = vld [vmem:[%s269 + $0x30] sm:$0xff]
          %v1862 = vld [vmem:[%s269 + $0x38] sm:$0xff]
          %v1863 = vld [vmem:[%s269 + $0x40] sm:$0xff]
          %v1864 = vld [vmem:[%s269 + $0x48] sm:$0xff]
          %v1865 = vld [vmem:[%s269 + $0x50] sm:$0xff]
          %v1866 = vld [vmem:[%s269 + $0x58] sm:$0xff]
          %v1867 = vld [vmem:[%s269 + $0x60] sm:$0xff]
          %v1868 = vld [vmem:[%s269 + $0x68] sm:$0xff]
          %v1869 = vld [vmem:[%s269 + $0x70] sm:$0xff]
          %v1870 = vld [vmem:[%s269 + $0x78] sm:$0xff]
          %v1871 = vld [vmem:[%s269 + $0x80] sm:$0xff]
          %v1872 = vld [vmem:[%s269 + $0x88] sm:$0xff]
          %v1873 = vld [vmem:[%s269 + $0x90] sm:$0xff]
          %v1874 = vld [vmem:[%s269 + $0x98] sm:$0xff]
          %v1875 = vld [vmem:[%s269 + $0xa0] sm:$0xff]
          %v1876 = vld [vmem:[%s269 + $0xa8] sm:$0xff]
          %v1877 = vld [vmem:[%s269 + $0xb0] sm:$0xff]
          %v1878 = vld [vmem:[%s269 + $0xb8] sm:$0xff]
          %v1879 = vld [vmem:[%s269 + $0xc0] sm:$0xff]
          %v1880 = vld [vmem:[%s269 + $0xc8] sm:$0xff]
          %v1881 = vld [vmem:[%s269 + $0xd0] sm:$0xff]
          %v1882 = vld [vmem:[%s269 + $0xd8] sm:$0xff]
          %v1883 = vld [vmem:[%s269 + $0xe0] sm:$0xff]
          %v1884 = vld [vmem:[%s269 + $0xe8] sm:$0xff]
          %v1885 = vld [vmem:[%s269 + $0xf0] sm:$0xff]
          %v1886 = vld [vmem:[%s269 + $0xf8] sm:$0xff]
          %v1887 = vunpack.c.l.bf16 %v1855
          %v1888 = vunpack.c.h.bf16 %v1855
          %v1889 = vunpack.c.l.bf16 %v1856
          %v1890 = vunpack.c.h.bf16 %v1856
          %v1891 = vunpack.c.l.bf16 %v1857
          %v1892 = vunpack.c.h.bf16 %v1857
          %v1893 = vunpack.c.l.bf16 %v1858
          %v1894 = vunpack.c.h.bf16 %v1858
          %v1895 = vunpack.c.l.bf16 %v1859
          %v1896 = vunpack.c.h.bf16 %v1859
          %v1897 = vunpack.c.l.bf16 %v1860
          %v1898 = vunpack.c.h.bf16 %v1860
          %v1899 = vunpack.c.l.bf16 %v1861
          %v1900 = vunpack.c.h.bf16 %v1861
          %v1901 = vunpack.c.l.bf16 %v1862
          %v1902 = vunpack.c.h.bf16 %v1862
          %v1903 = vunpack.c.l.bf16 %v1863
          %v1904 = vunpack.c.h.bf16 %v1863
          %v1905 = vunpack.c.l.bf16 %v1864
          %v1906 = vunpack.c.h.bf16 %v1864
          %v1907 = vunpack.c.l.bf16 %v1865
          %v1908 = vunpack.c.h.bf16 %v1865
          %v1909 = vunpack.c.l.bf16 %v1866
          %v1910 = vunpack.c.h.bf16 %v1866
          %v1911 = vunpack.c.l.bf16 %v1867
          %v1912 = vunpack.c.h.bf16 %v1867
          %v1913 = vunpack.c.l.bf16 %v1868
          %v1914 = vunpack.c.h.bf16 %v1868
          %v1915 = vunpack.c.l.bf16 %v1869
          %v1916 = vunpack.c.h.bf16 %v1869
          %v1917 = vunpack.c.l.bf16 %v1870
          %v1918 = vunpack.c.h.bf16 %v1870
          %v1919 = vunpack.c.l.bf16 %v1871
          %v1920 = vunpack.c.h.bf16 %v1871
          %v1921 = vunpack.c.l.bf16 %v1872
          %v1922 = vunpack.c.h.bf16 %v1872
          %v1923 = vunpack.c.l.bf16 %v1873
          %v1924 = vunpack.c.h.bf16 %v1873
          %v1925 = vunpack.c.l.bf16 %v1874
          %v1926 = vunpack.c.h.bf16 %v1874
          %v1927 = vunpack.c.l.bf16 %v1875
          %v1928 = vunpack.c.h.bf16 %v1875
          %v1929 = vunpack.c.l.bf16 %v1876
          %v1930 = vunpack.c.h.bf16 %v1876
          %v1931 = vunpack.c.l.bf16 %v1877
          %v1932 = vunpack.c.h.bf16 %v1877
          %v1933 = vunpack.c.l.bf16 %v1878
          %v1934 = vunpack.c.h.bf16 %v1878
          %v1935 = vunpack.c.l.bf16 %v1879
          %v1936 = vunpack.c.h.bf16 %v1879
          %v1937 = vunpack.c.l.bf16 %v1880
          %v1938 = vunpack.c.h.bf16 %v1880
          %v1939 = vunpack.c.l.bf16 %v1881
          %v1940 = vunpack.c.h.bf16 %v1881
          %v1941 = vunpack.c.l.bf16 %v1882
          %v1942 = vunpack.c.h.bf16 %v1882
          %v1943 = vunpack.c.l.bf16 %v1883
          %v1944 = vunpack.c.h.bf16 %v1883
          %v1945 = vunpack.c.l.bf16 %v1884
          %v1946 = vunpack.c.h.bf16 %v1884
          %v1947 = vunpack.c.l.bf16 %v1885
          %v1948 = vunpack.c.h.bf16 %v1885
          %v1949 = vunpack.c.l.bf16 %v1886
          %v1950 = vunpack.c.h.bf16 %v1886
          %v1951 = vmul.f32 %v1887, 0.8
          %v1952 = vmul.f32 %v1888, 0.8
          %v1953 = vmul.f32 %v1889, 0.8
          %v1954 = vmul.f32 %v1890, 0.8
          %v1955 = vmul.f32 %v1891, 0.8
          %v1956 = vmul.f32 %v1892, 0.8
          %v1957 = vmul.f32 %v1893, 0.8
          %v1958 = vmul.f32 %v1894, 0.8
          %v1959 = vmul.f32 %v1895, 0.8
          %v1960 = vmul.f32 %v1896, 0.8
          %v1961 = vmul.f32 %v1897, 0.8
          %v1962 = vmul.f32 %v1898, 0.8
          %v1963 = vmul.f32 %v1899, 0.8
          %v1964 = vmul.f32 %v1900, 0.8
          %v1965 = vmul.f32 %v1901, 0.8
          %v1966 = vmul.f32 %v1902, 0.8
          %v1967 = vmul.f32 %v1903, 0.8
          %v1968 = vmul.f32 %v1904, 0.8
          %v1969 = vmul.f32 %v1905, 0.8
          %v1970 = vmul.f32 %v1906, 0.8
          %v1971 = vmul.f32 %v1907, 0.8
          %v1972 = vmul.f32 %v1908, 0.8
          %v1973 = vmul.f32 %v1909, 0.8
          %v1974 = vmul.f32 %v1910, 0.8
          %v1975 = vmul.f32 %v1911, 0.8
          %v1976 = vmul.f32 %v1912, 0.8
          %v1977 = vmul.f32 %v1913, 0.8
          %v1978 = vmul.f32 %v1914, 0.8
          %v1979 = vmul.f32 %v1915, 0.8
          %v1980 = vmul.f32 %v1916, 0.8
          %v1981 = vmul.f32 %v1917, 0.8
          %v1982 = vmul.f32 %v1918, 0.8
          %v1983 = vmul.f32 %v1919, 0.8
          %v1984 = vmul.f32 %v1920, 0.8
          %v1985 = vmul.f32 %v1921, 0.8
          %v1986 = vmul.f32 %v1922, 0.8
          %v1987 = vmul.f32 %v1923, 0.8
          %v1988 = vmul.f32 %v1924, 0.8
          %v1989 = vmul.f32 %v1925, 0.8
          %v1990 = vmul.f32 %v1926, 0.8
          %v1991 = vmul.f32 %v1927, 0.8
          %v1992 = vmul.f32 %v1928, 0.8
          %v1993 = vmul.f32 %v1929, 0.8
          %v1994 = vmul.f32 %v1930, 0.8
          %v1995 = vmul.f32 %v1931, 0.8
          %v1996 = vmul.f32 %v1932, 0.8
          %v1997 = vmul.f32 %v1933, 0.8
          %v1998 = vmul.f32 %v1934, 0.8
          %v1999 = vmul.f32 %v1935, 0.8
          %v2000 = vmul.f32 %v1936, 0.8
          %v2001 = vmul.f32 %v1937, 0.8
          %v2002 = vmul.f32 %v1938, 0.8
          %v2003 = vmul.f32 %v1939, 0.8
          %v2004 = vmul.f32 %v1940, 0.8
          %v2005 = vmul.f32 %v1941, 0.8
          %v2006 = vmul.f32 %v1942, 0.8
          %v2007 = vmul.f32 %v1943, 0.8
          %v2008 = vmul.f32 %v1944, 0.8
          %v2009 = vmul.f32 %v1945, 0.8
          %v2010 = vmul.f32 %v1946, 0.8
          %v2011 = vmul.f32 %v1947, 0.8
          %v2012 = vmul.f32 %v1948, 0.8
          %v2013 = vmul.f32 %v1949, 0.8
          %v2014 = vmul.f32 %v1950, 0.8
          %v2015 = vadd.f32 %v1791, %v1951
          %v2016 = vadd.f32 %v1792, %v1952
          %v2017 = vadd.f32 %v1793, %v1953
          %v2018 = vadd.f32 %v1794, %v1954
          %v2019 = vadd.f32 %v1795, %v1955
          %v2020 = vadd.f32 %v1796, %v1956
          %v2021 = vadd.f32 %v1797, %v1957
          %v2022 = vadd.f32 %v1798, %v1958
          %v2023 = vadd.f32 %v1799, %v1959
          %v2024 = vadd.f32 %v1800, %v1960
          %v2025 = vadd.f32 %v1801, %v1961
          %v2026 = vadd.f32 %v1802, %v1962
          %v2027 = vadd.f32 %v1803, %v1963
          %v2028 = vadd.f32 %v1804, %v1964
          %v2029 = vadd.f32 %v1805, %v1965
          %v2030 = vadd.f32 %v1806, %v1966
          %v2031 = vadd.f32 %v1807, %v1967
          %v2032 = vadd.f32 %v1808, %v1968
          %v2033 = vadd.f32 %v1809, %v1969
          %v2034 = vadd.f32 %v1810, %v1970
          %v2035 = vadd.f32 %v1811, %v1971
          %v2036 = vadd.f32 %v1812, %v1972
          %v2037 = vadd.f32 %v1813, %v1973
          %v2038 = vadd.f32 %v1814, %v1974
          %v2039 = vadd.f32 %v1815, %v1975
          %v2040 = vadd.f32 %v1816, %v1976
          %v2041 = vadd.f32 %v1817, %v1977
          %v2042 = vadd.f32 %v1818, %v1978
          %v2043 = vadd.f32 %v1819, %v1979
          %v2044 = vadd.f32 %v1820, %v1980
          %v2045 = vadd.f32 %v1821, %v1981
          %v2046 = vadd.f32 %v1822, %v1982
          %v2047 = vadd.f32 %v1823, %v1983
          %v2048 = vadd.f32 %v1824, %v1984
          %v2049 = vadd.f32 %v1825, %v1985
          %v2050 = vadd.f32 %v1826, %v1986
          %v2051 = vadd.f32 %v1827, %v1987
          %v2052 = vadd.f32 %v1828, %v1988
          %v2053 = vadd.f32 %v1829, %v1989
          %v2054 = vadd.f32 %v1830, %v1990
          %v2055 = vadd.f32 %v1831, %v1991
          %v2056 = vadd.f32 %v1832, %v1992
          %v2057 = vadd.f32 %v1833, %v1993
          %v2058 = vadd.f32 %v1834, %v1994
          %v2059 = vadd.f32 %v1835, %v1995
          %v2060 = vadd.f32 %v1836, %v1996
          %v2061 = vadd.f32 %v1837, %v1997
          %v2062 = vadd.f32 %v1838, %v1998
          %v2063 = vadd.f32 %v1839, %v1999
          %v2064 = vadd.f32 %v1840, %v2000
          %v2065 = vadd.f32 %v1841, %v2001
          %v2066 = vadd.f32 %v1842, %v2002
          %v2067 = vadd.f32 %v1843, %v2003
          %v2068 = vadd.f32 %v1844, %v2004
          %v2069 = vadd.f32 %v1845, %v2005
          %v2070 = vadd.f32 %v1846, %v2006
          %v2071 = vadd.f32 %v1847, %v2007
          %v2072 = vadd.f32 %v1848, %v2008
          %v2073 = vadd.f32 %v1849, %v2009
          %v2074 = vadd.f32 %v1850, %v2010
          %v2075 = vadd.f32 %v1851, %v2011
          %v2076 = vadd.f32 %v1852, %v2012
          %v2077 = vadd.f32 %v1853, %v2013
          %v2078 = vadd.f32 %v1854, %v2014
          %2079 = vst [vmem:[#allocation2] sm:$0xff] %v2015
          %2080 = vst [vmem:[#allocation2 + $0x8] sm:$0xff] %v2016
          %2081 = vst [vmem:[#allocation2 + $0x10] sm:$0xff] %v2017
          %2082 = vst [vmem:[#allocation2 + $0x18] sm:$0xff] %v2018
          %2083 = vst [vmem:[#allocation2 + $0x20] sm:$0xff] %v2019
          %2084 = vst [vmem:[#allocation2 + $0x28] sm:$0xff] %v2020
          %2085 = vst [vmem:[#allocation2 + $0x30] sm:$0xff] %v2021
          %2086 = vst [vmem:[#allocation2 + $0x38] sm:$0xff] %v2022
          %2087 = vst [vmem:[#allocation2 + $0x40] sm:$0xff] %v2023
          %2088 = vst [vmem:[#allocation2 + $0x48] sm:$0xff] %v2024
          %2089 = vst [vmem:[#allocation2 + $0x50] sm:$0xff] %v2025
          %2090 = vst [vmem:[#allocation2 + $0x58] sm:$0xff] %v2026
          %2091 = vst [vmem:[#allocation2 + $0x60] sm:$0xff] %v2027
          %2092 = vst [vmem:[#allocation2 + $0x68] sm:$0xff] %v2028
          %2093 = vst [vmem:[#allocation2 + $0x70] sm:$0xff] %v2029
          %2094 = vst [vmem:[#allocation2 + $0x78] sm:$0xff] %v2030
          %2095 = vst [vmem:[#allocation2 + $0x80] sm:$0xff] %v2031
          %2096 = vst [vmem:[#allocation2 + $0x88] sm:$0xff] %v2032
          %2097 = vst [vmem:[#allocation2 + $0x90] sm:$0xff] %v2033
          %2098 = vst [vmem:[#allocation2 + $0x98] sm:$0xff] %v2034
          %2099 = vst [vmem:[#allocation2 + $0xa0] sm:$0xff] %v2035
          %2100 = vst [vmem:[#allocation2 + $0xa8] sm:$0xff] %v2036
          %2101 = vst [vmem:[#allocation2 + $0xb0] sm:$0xff] %v2037
          %2102 = vst [vmem:[#allocation2 + $0xb8] sm:$0xff] %v2038
          %2103 = vst [vmem:[#allocation2 + $0xc0] sm:$0xff] %v2039
          %2104 = vst [vmem:[#allocation2 + $0xc8] sm:$0xff] %v2040
          %2105 = vst [vmem:[#allocation2 + $0xd0] sm:$0xff] %v2041
          %2106 = vst [vmem:[#allocation2 + $0xd8] sm:$0xff] %v2042
          %2107 = vst [vmem:[#allocation2 + $0xe0] sm:$0xff] %v2043
          %2108 = vst [vmem:[#allocation2 + $0xe8] sm:$0xff] %v2044
          %2109 = vst [vmem:[#allocation2 + $0xf0] sm:$0xff] %v2045
          %2110 = vst [vmem:[#allocation2 + $0xf8] sm:$0xff] %v2046
          %2111 = vst [vmem:[#allocation2 + $0x100] sm:$0xff] %v2047
          %2112 = vst [vmem:[#allocation2 + $0x108] sm:$0xff] %v2048
          %2113 = vst [vmem:[#allocation2 + $0x110] sm:$0xff] %v2049
          %2114 = vst [vmem:[#allocation2 + $0x118] sm:$0xff] %v2050
          %2115 = vst [vmem:[#allocation2 + $0x120] sm:$0xff] %v2051
          %2116 = vst [vmem:[#allocation2 + $0x128] sm:$0xff] %v2052
          %2117 = vst [vmem:[#allocation2 + $0x130] sm:$0xff] %v2053
          %2118 = vst [vmem:[#allocation2 + $0x138] sm:$0xff] %v2054
          %2119 = vst [vmem:[#allocation2 + $0x140] sm:$0xff] %v2055
          %2120 = vst [vmem:[#allocation2 + $0x148] sm:$0xff] %v2056
          %2121 = vst [vmem:[#allocation2 + $0x150] sm:$0xff] %v2057
          %2122 = vst [vmem:[#allocation2 + $0x158] sm:$0xff] %v2058
          %2123 = vst [vmem:[#allocation2 + $0x160] sm:$0xff] %v2059
          %2124 = vst [vmem:[#allocation2 + $0x168] sm:$0xff] %v2060
          %2125 = vst [vmem:[#allocation2 + $0x170] sm:$0xff] %v2061
          %2126 = vst [vmem:[#allocation2 + $0x178] sm:$0xff] %v2062
          %2127 = vst [vmem:[#allocation2 + $0x180] sm:$0xff] %v2063
          %2128 = vst [vmem:[#allocation2 + $0x188] sm:$0xff] %v2064
          %2129 = vst [vmem:[#allocation2 + $0x190] sm:$0xff] %v2065
          %2130 = vst [vmem:[#allocation2 + $0x198] sm:$0xff] %v2066
          %2131 = vst [vmem:[#allocation2 + $0x1a0] sm:$0xff] %v2067
          %2132 = vst [vmem:[#allocation2 + $0x1a8] sm:$0xff] %v2068
          %2133 = vst [vmem:[#allocation2 + $0x1b0] sm:$0xff] %v2069
          %2134 = vst [vmem:[#allocation2 + $0x1b8] sm:$0xff] %v2070
          %2135 = vst [vmem:[#allocation2 + $0x1c0] sm:$0xff] %v2071
          %2136 = vst [vmem:[#allocation2 + $0x1c8] sm:$0xff] %v2072
          %2137 = vst [vmem:[#allocation2 + $0x1d0] sm:$0xff] %v2073
          %2138 = vst [vmem:[#allocation2 + $0x1d8] sm:$0xff] %v2074
          %2139 = vst [vmem:[#allocation2 + $0x1e0] sm:$0xff] %v2075
          %2140 = vst [vmem:[#allocation2 + $0x1e8] sm:$0xff] %v2076
          %2141 = vst [vmem:[#allocation2 + $0x1f0] sm:$0xff] %v2077
          %2142 = vst [vmem:[#allocation2 + $0x1f8] sm:$0xff] %v2078
        $region52: #{tpu_custom_call.1} parent=31 // pred_fallthru
          _
        %p2143 = scmp.eq.s32.totalorder %s28, %s29
        %p2144 = pnand %p310, %p2143
        %p2145 = pneg %p2144
        // Predicated region
        $region53: #{tpu_custom_call.1} parent=31 // pred_check
          _
        $region54: #{tpu_custom_call.1} parent=31 // pred_check_branch
          %2147 = sbr.rel (%p2144) target = $region56
        $region55: #{tpu_custom_call.1} parent=31 // pred_region
          %v2148 = vld [vmem:[#allocation2] sm:$0xff]
          %v2149 = vld [vmem:[#allocation2 + $0x8] sm:$0xff]
          %v2150 = vld [vmem:[#allocation2 + $0x10] sm:$0xff]
          %v2151 = vld [vmem:[#allocation2 + $0x18] sm:$0xff]
          %v2152 = vld [vmem:[#allocation2 + $0x20] sm:$0xff]
          %v2153 = vld [vmem:[#allocation2 + $0x28] sm:$0xff]
          %v2154 = vld [vmem:[#allocation2 + $0x30] sm:$0xff]
          %v2155 = vld [vmem:[#allocation2 + $0x38] sm:$0xff]
          %v2156 = vld [vmem:[#allocation2 + $0x40] sm:$0xff]
          %v2157 = vld [vmem:[#allocation2 + $0x48] sm:$0xff]
          %v2158 = vld [vmem:[#allocation2 + $0x50] sm:$0xff]
          %v2159 = vld [vmem:[#allocation2 + $0x58] sm:$0xff]
          %v2160 = vld [vmem:[#allocation2 + $0x60] sm:$0xff]
          %v2161 = vld [vmem:[#allocation2 + $0x68] sm:$0xff]
          %v2162 = vld [vmem:[#allocation2 + $0x70] sm:$0xff]
          %v2163 = vld [vmem:[#allocation2 + $0x78] sm:$0xff]
          %v2164 = vld [vmem:[#allocation2 + $0x80] sm:$0xff]
          %v2165 = vld [vmem:[#allocation2 + $0x88] sm:$0xff]
          %v2166 = vld [vmem:[#allocation2 + $0x90] sm:$0xff]
          %v2167 = vld [vmem:[#allocation2 + $0x98] sm:$0xff]
          %v2168 = vld [vmem:[#allocation2 + $0xa0] sm:$0xff]
          %v2169 = vld [vmem:[#allocation2 + $0xa8] sm:$0xff]
          %v2170 = vld [vmem:[#allocation2 + $0xb0] sm:$0xff]
          %v2171 = vld [vmem:[#allocation2 + $0xb8] sm:$0xff]
          %v2172 = vld [vmem:[#allocation2 + $0xc0] sm:$0xff]
          %v2173 = vld [vmem:[#allocation2 + $0xc8] sm:$0xff]
          %v2174 = vld [vmem:[#allocation2 + $0xd0] sm:$0xff]
          %v2175 = vld [vmem:[#allocation2 + $0xd8] sm:$0xff]
          %v2176 = vld [vmem:[#allocation2 + $0xe0] sm:$0xff]
          %v2177 = vld [vmem:[#allocation2 + $0xe8] sm:$0xff]
          %v2178 = vld [vmem:[#allocation2 + $0xf0] sm:$0xff]
          %v2179 = vld [vmem:[#allocation2 + $0xf8] sm:$0xff]
          %v2180 = vld [vmem:[#allocation2 + $0x100] sm:$0xff]
          %v2181 = vld [vmem:[#allocation2 + $0x108] sm:$0xff]
          %v2182 = vld [vmem:[#allocation2 + $0x110] sm:$0xff]
          %v2183 = vld [vmem:[#allocation2 + $0x118] sm:$0xff]
          %v2184 = vld [vmem:[#allocation2 + $0x120] sm:$0xff]
          %v2185 = vld [vmem:[#allocation2 + $0x128] sm:$0xff]
          %v2186 = vld [vmem:[#allocation2 + $0x130] sm:$0xff]
          %v2187 = vld [vmem:[#allocation2 + $0x138] sm:$0xff]
          %v2188 = vld [vmem:[#allocation2 + $0x140] sm:$0xff]
          %v2189 = vld [vmem:[#allocation2 + $0x148] sm:$0xff]
          %v2190 = vld [vmem:[#allocation2 + $0x150] sm:$0xff]
          %v2191 = vld [vmem:[#allocation2 + $0x158] sm:$0xff]
          %v2192 = vld [vmem:[#allocation2 + $0x160] sm:$0xff]
          %v2193 = vld [vmem:[#allocation2 + $0x168] sm:$0xff]
          %v2194 = vld [vmem:[#allocation2 + $0x170] sm:$0xff]
          %v2195 = vld [vmem:[#allocation2 + $0x178] sm:$0xff]
          %v2196 = vld [vmem:[#allocation2 + $0x180] sm:$0xff]
          %v2197 = vld [vmem:[#allocation2 + $0x188] sm:$0xff]
          %v2198 = vld [vmem:[#allocation2 + $0x190] sm:$0xff]
          %v2199 = vld [vmem:[#allocation2 + $0x198] sm:$0xff]
          %v2200 = vld [vmem:[#allocation2 + $0x1a0] sm:$0xff]
          %v2201 = vld [vmem:[#allocation2 + $0x1a8] sm:$0xff]
          %v2202 = vld [vmem:[#allocation2 + $0x1b0] sm:$0xff]
          %v2203 = vld [vmem:[#allocation2 + $0x1b8] sm:$0xff]
          %v2204 = vld [vmem:[#allocation2 + $0x1c0] sm:$0xff]
          %v2205 = vld [vmem:[#allocation2 + $0x1c8] sm:$0xff]
          %v2206 = vld [vmem:[#allocation2 + $0x1d0] sm:$0xff]
          %v2207 = vld [vmem:[#allocation2 + $0x1d8] sm:$0xff]
          %v2208 = vld [vmem:[#allocation2 + $0x1e0] sm:$0xff]
          %v2209 = vld [vmem:[#allocation2 + $0x1e8] sm:$0xff]
          %v2210 = vld [vmem:[#allocation2 + $0x1f0] sm:$0xff]
          %v2211 = vld [vmem:[#allocation2 + $0x1f8] sm:$0xff]
          %v2212 = vlaneseq
          %v2213 = vshrl.u32 %v2212, 7
          %v2214 = vadd.s32 %v2213, 8
          %v2215 = vadd.s32 %v2213, 16
          %v2216 = vadd.s32 %v2213, 24
          %v2217 = vadd.s32 %v2213, 32
          %v2218 = vadd.s32 %v2213, 40
          %v2219 = vadd.s32 %v2213, 48
          %v2220 = vadd.s32 %v2213, 56
          %v2221 = vadd.s32 %v2213, 64
          %v2222 = vadd.s32 %v2213, 72
          %v2223 = vadd.s32 %v2213, 80
          %v2224 = vadd.s32 %v2213, 88
          %v2225 = vadd.s32 %v2213, 96
          %v2226 = vadd.s32 %v2213, 104
          %v2227 = vadd.s32 %v2213, 112
          %v2228 = vadd.s32 %v2213, 120
          %v2229 = vadd.s32 %v2213, 128
          %v2230 = vadd.s32 %v2213, 136
          %v2231 = vadd.s32 %v2213, 144
          %v2232 = vadd.s32 %v2213, 152
          %v2233 = vadd.s32 %v2213, 160
          %v2234 = vadd.s32 %v2213, 168
          %v2235 = vadd.s32 %v2213, 176
          %v2236 = vadd.s32 %v2213, 184
          %v2237 = vadd.s32 %v2213, 192
          %v2238 = vadd.s32 %v2213, 200
          %v2239 = vadd.s32 %v2213, 208
          %v2240 = vadd.s32 %v2213, 216
          %v2241 = vadd.s32 %v2213, 224
          %v2242 = vadd.s32 %v2213, 232
          %v2243 = vadd.s32 %v2213, 240
          %v2244 = vadd.s32 %v2213, 248
          %v2245 = vlaneseq
          %v2246 = vand.u32 %v2245, 127
          %v2247 = vadd.s32 %v2246, 128
          %vm2248 = vcmp.eq.s32.totalorder %v2213, %v2246
          %vm2249 = vcmp.eq.s32.totalorder %v2213, %v2247
          %vm2250 = vcmp.eq.s32.totalorder %v2214, %v2246
          %vm2251 = vcmp.eq.s32.totalorder %v2214, %v2247
          %vm2252 = vcmp.eq.s32.totalorder %v2215, %v2246
          %vm2253 = vcmp.eq.s32.totalorder %v2215, %v2247
          %vm2254 = vcmp.eq.s32.totalorder %v2216, %v2246
          %vm2255 = vcmp.eq.s32.totalorder %v2216, %v2247
          %vm2256 = vcmp.eq.s32.totalorder %v2217, %v2246
          %vm2257 = vcmp.eq.s32.totalorder %v2217, %v2247
          %vm2258 = vcmp.eq.s32.totalorder %v2218, %v2246
          %vm2259 = vcmp.eq.s32.totalorder %v2218, %v2247
          %vm2260 = vcmp.eq.s32.totalorder %v2219, %v2246
          %vm2261 = vcmp.eq.s32.totalorder %v2219, %v2247
          %vm2262 = vcmp.eq.s32.totalorder %v2220, %v2246
          %vm2263 = vcmp.eq.s32.totalorder %v2220, %v2247
          %vm2264 = vcmp.eq.s32.totalorder %v2221, %v2246
          %vm2265 = vcmp.eq.s32.totalorder %v2221, %v2247
          %vm2266 = vcmp.eq.s32.totalorder %v2222, %v2246
          %vm2267 = vcmp.eq.s32.totalorder %v2222, %v2247
          %vm2268 = vcmp.eq.s32.totalorder %v2223, %v2246
          %vm2269 = vcmp.eq.s32.totalorder %v2223, %v2247
          %vm2270 = vcmp.eq.s32.totalorder %v2224, %v2246
          %vm2271 = vcmp.eq.s32.totalorder %v2224, %v2247
          %vm2272 = vcmp.eq.s32.totalorder %v2225, %v2246
          %vm2273 = vcmp.eq.s32.totalorder %v2225, %v2247
          %vm2274 = vcmp.eq.s32.totalorder %v2226, %v2246
          %vm2275 = vcmp.eq.s32.totalorder %v2226, %v2247
          %vm2276 = vcmp.eq.s32.totalorder %v2227, %v2246
          %vm2277 = vcmp.eq.s32.totalorder %v2227, %v2247
          %vm2278 = vcmp.eq.s32.totalorder %v2228, %v2246
          %vm2279 = vcmp.eq.s32.totalorder %v2228, %v2247
          %vm2280 = vcmp.eq.s32.totalorder %v2229, %v2246
          %vm2281 = vcmp.eq.s32.totalorder %v2229, %v2247
          %vm2282 = vcmp.eq.s32.totalorder %v2230, %v2246
          %vm2283 = vcmp.eq.s32.totalorder %v2230, %v2247
          %vm2284 = vcmp.eq.s32.totalorder %v2231, %v2246
          %vm2285 = vcmp.eq.s32.totalorder %v2231, %v2247
          %vm2286 = vcmp.eq.s32.totalorder %v2232, %v2246
          %vm2287 = vcmp.eq.s32.totalorder %v2232, %v2247
          %vm2288 = vcmp.eq.s32.totalorder %v2233, %v2246
          %vm2289 = vcmp.eq.s32.totalorder %v2233, %v2247
          %vm2290 = vcmp.eq.s32.totalorder %v2234, %v2246
          %vm2291 = vcmp.eq.s32.totalorder %v2234, %v2247
          %vm2292 = vcmp.eq.s32.totalorder %v2235, %v2246
          %vm2293 = vcmp.eq.s32.totalorder %v2235, %v2247
          %vm2294 = vcmp.eq.s32.totalorder %v2236, %v2246
          %vm2295 = vcmp.eq.s32.totalorder %v2236, %v2247
          %vm2296 = vcmp.eq.s32.totalorder %v2237, %v2246
          %vm2297 = vcmp.eq.s32.totalorder %v2237, %v2247
          %vm2298 = vcmp.eq.s32.totalorder %v2238, %v2246
          %vm2299 = vcmp.eq.s32.totalorder %v2238, %v2247
          %vm2300 = vcmp.eq.s32.totalorder %v2239, %v2246
          %vm2301 = vcmp.eq.s32.totalorder %v2239, %v2247
          %vm2302 = vcmp.eq.s32.totalorder %v2240, %v2246
          %vm2303 = vcmp.eq.s32.totalorder %v2240, %v2247
          %vm2304 = vcmp.eq.s32.totalorder %v2241, %v2246
          %vm2305 = vcmp.eq.s32.totalorder %v2241, %v2247
          %vm2306 = vcmp.eq.s32.totalorder %v2242, %v2246
          %vm2307 = vcmp.eq.s32.totalorder %v2242, %v2247
          %vm2308 = vcmp.eq.s32.totalorder %v2243, %v2246
          %vm2309 = vcmp.eq.s32.totalorder %v2243, %v2247
          %vm2310 = vcmp.eq.s32.totalorder %v2244, %v2246
          %vm2311 = vcmp.eq.s32.totalorder %v2244, %v2247
          %v2312 = vsel %vm2248, 1, 0
          %v2313 = vsel %vm2249, 1, 0
          %v2314 = vsel %vm2250, 1, 0
          %v2315 = vsel %vm2251, 1, 0
          %v2316 = vsel %vm2252, 1, 0
          %v2317 = vsel %vm2253, 1, 0
          %v2318 = vsel %vm2254, 1, 0
          %v2319 = vsel %vm2255, 1, 0
          %v2320 = vsel %vm2256, 1, 0
          %v2321 = vsel %vm2257, 1, 0
          %v2322 = vsel %vm2258, 1, 0
          %v2323 = vsel %vm2259, 1, 0
          %v2324 = vsel %vm2260, 1, 0
          %v2325 = vsel %vm2261, 1, 0
          %v2326 = vsel %vm2262, 1, 0
          %v2327 = vsel %vm2263, 1, 0
          %v2328 = vsel %vm2264, 1, 0
          %v2329 = vsel %vm2265, 1, 0
          %v2330 = vsel %vm2266, 1, 0
          %v2331 = vsel %vm2267, 1, 0
          %v2332 = vsel %vm2268, 1, 0
          %v2333 = vsel %vm2269, 1, 0
          %v2334 = vsel %vm2270, 1, 0
          %v2335 = vsel %vm2271, 1, 0
          %v2336 = vsel %vm2272, 1, 0
          %v2337 = vsel %vm2273, 1, 0
          %v2338 = vsel %vm2274, 1, 0
          %v2339 = vsel %vm2275, 1, 0
          %v2340 = vsel %vm2276, 1, 0
          %v2341 = vsel %vm2277, 1, 0
          %v2342 = vsel %vm2278, 1, 0
          %v2343 = vsel %vm2279, 1, 0
          %v2344 = vsel %vm2280, 1, 0
          %v2345 = vsel %vm2281, 1, 0
          %v2346 = vsel %vm2282, 1, 0
          %v2347 = vsel %vm2283, 1, 0
          %v2348 = vsel %vm2284, 1, 0
          %v2349 = vsel %vm2285, 1, 0
          %v2350 = vsel %vm2286, 1, 0
          %v2351 = vsel %vm2287, 1, 0
          %v2352 = vsel %vm2288, 1, 0
          %v2353 = vsel %vm2289, 1, 0
          %v2354 = vsel %vm2290, 1, 0
          %v2355 = vsel %vm2291, 1, 0
          %v2356 = vsel %vm2292, 1, 0
          %v2357 = vsel %vm2293, 1, 0
          %v2358 = vsel %vm2294, 1, 0
          %v2359 = vsel %vm2295, 1, 0
          %v2360 = vsel %vm2296, 1, 0
          %v2361 = vsel %vm2297, 1, 0
          %v2362 = vsel %vm2298, 1, 0
          %v2363 = vsel %vm2299, 1, 0
          %v2364 = vsel %vm2300, 1, 0
          %v2365 = vsel %vm2301, 1, 0
          %v2366 = vsel %vm2302, 1, 0
          %v2367 = vsel %vm2303, 1, 0
          %v2368 = vsel %vm2304, 1, 0
          %v2369 = vsel %vm2305, 1, 0
          %v2370 = vsel %vm2306, 1, 0
          %v2371 = vsel %vm2307, 1, 0
          %v2372 = vsel %vm2308, 1, 0
          %v2373 = vsel %vm2309, 1, 0
          %v2374 = vsel %vm2310, 1, 0
          %v2375 = vsel %vm2311, 1, 0
          %v2376 = vcvt.s32.f32 %v2312
          %v2377 = vcvt.s32.f32 %v2313
          %v2378 = vcvt.s32.f32 %v2314
          %v2379 = vcvt.s32.f32 %v2315
          %v2380 = vcvt.s32.f32 %v2316
          %v2381 = vcvt.s32.f32 %v2317
          %v2382 = vcvt.s32.f32 %v2318
          %v2383 = vcvt.s32.f32 %v2319
          %v2384 = vcvt.s32.f32 %v2320
          %v2385 = vcvt.s32.f32 %v2321
          %v2386 = vcvt.s32.f32 %v2322
          %v2387 = vcvt.s32.f32 %v2323
          %v2388 = vcvt.s32.f32 %v2324
          %v2389 = vcvt.s32.f32 %v2325
          %v2390 = vcvt.s32.f32 %v2326
          %v2391 = vcvt.s32.f32 %v2327
          %v2392 = vcvt.s32.f32 %v2328
          %v2393 = vcvt.s32.f32 %v2329
          %v2394 = vcvt.s32.f32 %v2330
          %v2395 = vcvt.s32.f32 %v2331
          %v2396 = vcvt.s32.f32 %v2332
          %v2397 = vcvt.s32.f32 %v2333
          %v2398 = vcvt.s32.f32 %v2334
          %v2399 = vcvt.s32.f32 %v2335
          %v2400 = vcvt.s32.f32 %v2336
          %v2401 = vcvt.s32.f32 %v2337
          %v2402 = vcvt.s32.f32 %v2338
          %v2403 = vcvt.s32.f32 %v2339
          %v2404 = vcvt.s32.f32 %v2340
          %v2405 = vcvt.s32.f32 %v2341
          %v2406 = vcvt.s32.f32 %v2342
          %v2407 = vcvt.s32.f32 %v2343
          %v2408 = vcvt.s32.f32 %v2344
          %v2409 = vcvt.s32.f32 %v2345
          %v2410 = vcvt.s32.f32 %v2346
          %v2411 = vcvt.s32.f32 %v2347
          %v2412 = vcvt.s32.f32 %v2348
          %v2413 = vcvt.s32.f32 %v2349
          %v2414 = vcvt.s32.f32 %v2350
          %v2415 = vcvt.s32.f32 %v2351
          %v2416 = vcvt.s32.f32 %v2352
          %v2417 = vcvt.s32.f32 %v2353
          %v2418 = vcvt.s32.f32 %v2354
          %v2419 = vcvt.s32.f32 %v2355
          %v2420 = vcvt.s32.f32 %v2356
          %v2421 = vcvt.s32.f32 %v2357
          %v2422 = vcvt.s32.f32 %v2358
          %v2423 = vcvt.s32.f32 %v2359
          %v2424 = vcvt.s32.f32 %v2360
          %v2425 = vcvt.s32.f32 %v2361
          %v2426 = vcvt.s32.f32 %v2362
          %v2427 = vcvt.s32.f32 %v2363
          %v2428 = vcvt.s32.f32 %v2364
          %v2429 = vcvt.s32.f32 %v2365
          %v2430 = vcvt.s32.f32 %v2366
          %v2431 = vcvt.s32.f32 %v2367
          %v2432 = vcvt.s32.f32 %v2368
          %v2433 = vcvt.s32.f32 %v2369
          %v2434 = vcvt.s32.f32 %v2370
          %v2435 = vcvt.s32.f32 %v2371
          %v2436 = vcvt.s32.f32 %v2372
          %v2437 = vcvt.s32.f32 %v2373
          %v2438 = vcvt.s32.f32 %v2374
          %v2439 = vcvt.s32.f32 %v2375
          %v2440 = vmul.f32 %v2376, 0.18
          %v2441 = vmul.f32 %v2377, 0.18
          %v2442 = vmul.f32 %v2378, 0.18
          %v2443 = vmul.f32 %v2379, 0.18
          %v2444 = vmul.f32 %v2380, 0.18
          %v2445 = vmul.f32 %v2381, 0.18
          %v2446 = vmul.f32 %v2382, 0.18
          %v2447 = vmul.f32 %v2383, 0.18
          %v2448 = vmul.f32 %v2384, 0.18
          %v2449 = vmul.f32 %v2385, 0.18
          %v2450 = vmul.f32 %v2386, 0.18
          %v2451 = vmul.f32 %v2387, 0.18
          %v2452 = vmul.f32 %v2388, 0.18
          %v2453 = vmul.f32 %v2389, 0.18
          %v2454 = vmul.f32 %v2390, 0.18
          %v2455 = vmul.f32 %v2391, 0.18
          %v2456 = vmul.f32 %v2392, 0.18
          %v2457 = vmul.f32 %v2393, 0.18
          %v2458 = vmul.f32 %v2394, 0.18
          %v2459 = vmul.f32 %v2395, 0.18
          %v2460 = vmul.f32 %v2396, 0.18
          %v2461 = vmul.f32 %v2397, 0.18
          %v2462 = vmul.f32 %v2398, 0.18
          %v2463 = vmul.f32 %v2399, 0.18
          %v2464 = vmul.f32 %v2400, 0.18
          %v2465 = vmul.f32 %v2401, 0.18
          %v2466 = vmul.f32 %v2402, 0.18
          %v2467 = vmul.f32 %v2403, 0.18
          %v2468 = vmul.f32 %v2404, 0.18
          %v2469 = vmul.f32 %v2405, 0.18
          %v2470 = vmul.f32 %v2406, 0.18
          %v2471 = vmul.f32 %v2407, 0.18
          %v2472 = vmul.f32 %v2408, 0.18
          %v2473 = vmul.f32 %v2409, 0.18
          %v2474 = vmul.f32 %v2410, 0.18
          %v2475 = vmul.f32 %v2411, 0.18
          %v2476 = vmul.f32 %v2412, 0.18
          %v2477 = vmul.f32 %v2413, 0.18
          %v2478 = vmul.f32 %v2414, 0.18
          %v2479 = vmul.f32 %v2415, 0.18
          %v2480 = vmul.f32 %v2416, 0.18
          %v2481 = vmul.f32 %v2417, 0.18
          %v2482 = vmul.f32 %v2418, 0.18
          %v2483 = vmul.f32 %v2419, 0.18
          %v2484 = vmul.f32 %v2420, 0.18
          %v2485 = vmul.f32 %v2421, 0.18
          %v2486 = vmul.f32 %v2422, 0.18
          %v2487 = vmul.f32 %v2423, 0.18
          %v2488 = vmul.f32 %v2424, 0.18
          %v2489 = vmul.f32 %v2425, 0.18
          %v2490 = vmul.f32 %v2426, 0.18
          %v2491 = vmul.f32 %v2427, 0.18
          %v2492 = vmul.f32 %v2428, 0.18
          %v2493 = vmul.f32 %v2429, 0.18
          %v2494 = vmul.f32 %v2430, 0.18
          %v2495 = vmul.f32 %v2431, 0.18
          %v2496 = vmul.f32 %v2432, 0.18
          %v2497 = vmul.f32 %v2433, 0.18
          %v2498 = vmul.f32 %v2434, 0.18
          %v2499 = vmul.f32 %v2435, 0.18
          %v2500 = vmul.f32 %v2436, 0.18
          %v2501 = vmul.f32 %v2437, 0.18
          %v2502 = vmul.f32 %v2438, 0.18
          %v2503 = vmul.f32 %v2439, 0.18
          %v2504 = vadd.f32 %v2148, %v2440
          %v2505 = vadd.f32 %v2149, %v2441
          %v2506 = vadd.f32 %v2150, %v2442
          %v2507 = vadd.f32 %v2151, %v2443
          %v2508 = vadd.f32 %v2152, %v2444
          %v2509 = vadd.f32 %v2153, %v2445
          %v2510 = vadd.f32 %v2154, %v2446
          %v2511 = vadd.f32 %v2155, %v2447
          %v2512 = vadd.f32 %v2156, %v2448
          %v2513 = vadd.f32 %v2157, %v2449
          %v2514 = vadd.f32 %v2158, %v2450
          %v2515 = vadd.f32 %v2159, %v2451
          %v2516 = vadd.f32 %v2160, %v2452
          %v2517 = vadd.f32 %v2161, %v2453
          %v2518 = vadd.f32 %v2162, %v2454
          %v2519 = vadd.f32 %v2163, %v2455
          %v2520 = vadd.f32 %v2164, %v2456
          %v2521 = vadd.f32 %v2165, %v2457
          %v2522 = vadd.f32 %v2166, %v2458
          %v2523 = vadd.f32 %v2167, %v2459
          %v2524 = vadd.f32 %v2168, %v2460
          %v2525 = vadd.f32 %v2169, %v2461
          %v2526 = vadd.f32 %v2170, %v2462
          %v2527 = vadd.f32 %v2171, %v2463
          %v2528 = vadd.f32 %v2172, %v2464
          %v2529 = vadd.f32 %v2173, %v2465
          %v2530 = vadd.f32 %v2174, %v2466
          %v2531 = vadd.f32 %v2175, %v2467
          %v2532 = vadd.f32 %v2176, %v2468
          %v2533 = vadd.f32 %v2177, %v2469
          %v2534 = vadd.f32 %v2178, %v2470
          %v2535 = vadd.f32 %v2179, %v2471
          %v2536 = vadd.f32 %v2180, %v2472
          %v2537 = vadd.f32 %v2181, %v2473
          %v2538 = vadd.f32 %v2182, %v2474
          %v2539 = vadd.f32 %v2183, %v2475
          %v2540 = vadd.f32 %v2184, %v2476
          %v2541 = vadd.f32 %v2185, %v2477
          %v2542 = vadd.f32 %v2186, %v2478
          %v2543 = vadd.f32 %v2187, %v2479
          %v2544 = vadd.f32 %v2188, %v2480
          %v2545 = vadd.f32 %v2189, %v2481
          %v2546 = vadd.f32 %v2190, %v2482
          %v2547 = vadd.f32 %v2191, %v2483
          %v2548 = vadd.f32 %v2192, %v2484
          %v2549 = vadd.f32 %v2193, %v2485
          %v2550 = vadd.f32 %v2194, %v2486
          %v2551 = vadd.f32 %v2195, %v2487
          %v2552 = vadd.f32 %v2196, %v2488
          %v2553 = vadd.f32 %v2197, %v2489
          %v2554 = vadd.f32 %v2198, %v2490
          %v2555 = vadd.f32 %v2199, %v2491
          %v2556 = vadd.f32 %v2200, %v2492
          %v2557 = vadd.f32 %v2201, %v2493
          %v2558 = vadd.f32 %v2202, %v2494
          %v2559 = vadd.f32 %v2203, %v2495
          %v2560 = vadd.f32 %v2204, %v2496
          %v2561 = vadd.f32 %v2205, %v2497
          %v2562 = vadd.f32 %v2206, %v2498
          %v2563 = vadd.f32 %v2207, %v2499
          %v2564 = vadd.f32 %v2208, %v2500
          %v2565 = vadd.f32 %v2209, %v2501
          %v2566 = vadd.f32 %v2210, %v2502
          %v2567 = vadd.f32 %v2211, %v2503
          %2568 = vst [vmem:[#allocation2] sm:$0xff] %v2504
          %2569 = vst [vmem:[#allocation2 + $0x8] sm:$0xff] %v2505
          %2570 = vst [vmem:[#allocation2 + $0x10] sm:$0xff] %v2506
          %2571 = vst [vmem:[#allocation2 + $0x18] sm:$0xff] %v2507
          %2572 = vst [vmem:[#allocation2 + $0x20] sm:$0xff] %v2508
          %2573 = vst [vmem:[#allocation2 + $0x28] sm:$0xff] %v2509
          %2574 = vst [vmem:[#allocation2 + $0x30] sm:$0xff] %v2510
          %2575 = vst [vmem:[#allocation2 + $0x38] sm:$0xff] %v2511
          %2576 = vst [vmem:[#allocation2 + $0x40] sm:$0xff] %v2512
          %2577 = vst [vmem:[#allocation2 + $0x48] sm:$0xff] %v2513
          %2578 = vst [vmem:[#allocation2 + $0x50] sm:$0xff] %v2514
          %2579 = vst [vmem:[#allocation2 + $0x58] sm:$0xff] %v2515
          %2580 = vst [vmem:[#allocation2 + $0x60] sm:$0xff] %v2516
          %2581 = vst [vmem:[#allocation2 + $0x68] sm:$0xff] %v2517
          %2582 = vst [vmem:[#allocation2 + $0x70] sm:$0xff] %v2518
          %2583 = vst [vmem:[#allocation2 + $0x78] sm:$0xff] %v2519
          %2584 = vst [vmem:[#allocation2 + $0x80] sm:$0xff] %v2520
          %2585 = vst [vmem:[#allocation2 + $0x88] sm:$0xff] %v2521
          %2586 = vst [vmem:[#allocation2 + $0x90] sm:$0xff] %v2522
          %2587 = vst [vmem:[#allocation2 + $0x98] sm:$0xff] %v2523
          %2588 = vst [vmem:[#allocation2 + $0xa0] sm:$0xff] %v2524
          %2589 = vst [vmem:[#allocation2 + $0xa8] sm:$0xff] %v2525
          %2590 = vst [vmem:[#allocation2 + $0xb0] sm:$0xff] %v2526
          %2591 = vst [vmem:[#allocation2 + $0xb8] sm:$0xff] %v2527
          %2592 = vst [vmem:[#allocation2 + $0xc0] sm:$0xff] %v2528
          %2593 = vst [vmem:[#allocation2 + $0xc8] sm:$0xff] %v2529
          %2594 = vst [vmem:[#allocation2 + $0xd0] sm:$0xff] %v2530
          %2595 = vst [vmem:[#allocation2 + $0xd8] sm:$0xff] %v2531
          %2596 = vst [vmem:[#allocation2 + $0xe0] sm:$0xff] %v2532
          %2597 = vst [vmem:[#allocation2 + $0xe8] sm:$0xff] %v2533
          %2598 = vst [vmem:[#allocation2 + $0xf0] sm:$0xff] %v2534
          %2599 = vst [vmem:[#allocation2 + $0xf8] sm:$0xff] %v2535
          %2600 = vst [vmem:[#allocation2 + $0x100] sm:$0xff] %v2536
          %2601 = vst [vmem:[#allocation2 + $0x108] sm:$0xff] %v2537
          %2602 = vst [vmem:[#allocation2 + $0x110] sm:$0xff] %v2538
          %2603 = vst [vmem:[#allocation2 + $0x118] sm:$0xff] %v2539
          %2604 = vst [vmem:[#allocation2 + $0x120] sm:$0xff] %v2540
          %2605 = vst [vmem:[#allocation2 + $0x128] sm:$0xff] %v2541
          %2606 = vst [vmem:[#allocation2 + $0x130] sm:$0xff] %v2542
          %2607 = vst [vmem:[#allocation2 + $0x138] sm:$0xff] %v2543
          %2608 = vst [vmem:[#allocation2 + $0x140] sm:$0xff] %v2544
          %2609 = vst [vmem:[#allocation2 + $0x148] sm:$0xff] %v2545
          %2610 = vst [vmem:[#allocation2 + $0x150] sm:$0xff] %v2546
          %2611 = vst [vmem:[#allocation2 + $0x158] sm:$0xff] %v2547
          %2612 = vst [vmem:[#allocation2 + $0x160] sm:$0xff] %v2548
          %2613 = vst [vmem:[#allocation2 + $0x168] sm:$0xff] %v2549
          %2614 = vst [vmem:[#allocation2 + $0x170] sm:$0xff] %v2550
          %2615 = vst [vmem:[#allocation2 + $0x178] sm:$0xff] %v2551
          %2616 = vst [vmem:[#allocation2 + $0x180] sm:$0xff] %v2552
          %2617 = vst [vmem:[#allocation2 + $0x188] sm:$0xff] %v2553
          %2618 = vst [vmem:[#allocation2 + $0x190] sm:$0xff] %v2554
          %2619 = vst [vmem:[#allocation2 + $0x198] sm:$0xff] %v2555
          %2620 = vst [vmem:[#allocation2 + $0x1a0] sm:$0xff] %v2556
          %2621 = vst [vmem:[#allocation2 + $0x1a8] sm:$0xff] %v2557
          %2622 = vst [vmem:[#allocation2 + $0x1b0] sm:$0xff] %v2558
          %2623 = vst [vmem:[#allocation2 + $0x1b8] sm:$0xff] %v2559
          %2624 = vst [vmem:[#allocation2 + $0x1c0] sm:$0xff] %v2560
          %2625 = vst [vmem:[#allocation2 + $0x1c8] sm:$0xff] %v2561
          %2626 = vst [vmem:[#allocation2 + $0x1d0] sm:$0xff] %v2562
          %2627 = vst [vmem:[#allocation2 + $0x1d8] sm:$0xff] %v2563
          %2628 = vst [vmem:[#allocation2 + $0x1e0] sm:$0xff] %v2564
          %2629 = vst [vmem:[#allocation2 + $0x1e8] sm:$0xff] %v2565
          %2630 = vst [vmem:[#allocation2 + $0x1f0] sm:$0xff] %v2566
          %2631 = vst [vmem:[#allocation2 + $0x1f8] sm:$0xff] %v2567
        $region56: #{tpu_custom_call.1} parent=31 // pred_fallthru
          _
        // Predicated region
        $region57: #{tpu_custom_call.1} parent=31 // pred_check
          %p2632 = pneg %p310
        $region58: #{tpu_custom_call.1} parent=31 // pred_check_branch
          %2634 = sbr.rel (%p2632) target = $region60
        $region59: #{tpu_custom_call.1} parent=31 // pred_region
          %v2635 = vld [vmem:[#allocation2] sm:$0xff]
          %v2636 = vld [vmem:[#allocation2 + $0x8] sm:$0xff]
          %v2637 = vld [vmem:[#allocation2 + $0x10] sm:$0xff]
          %v2638 = vld [vmem:[#allocation2 + $0x18] sm:$0xff]
          %v2639 = vld [vmem:[#allocation2 + $0x20] sm:$0xff]
          %v2640 = vld [vmem:[#allocation2 + $0x28] sm:$0xff]
          %v2641 = vld [vmem:[#allocation2 + $0x30] sm:$0xff]
          %v2642 = vld [vmem:[#allocation2 + $0x38] sm:$0xff]
          %v2643 = vld [vmem:[#allocation2 + $0x40] sm:$0xff]
          %v2644 = vld [vmem:[#allocation2 + $0x48] sm:$0xff]
          %v2645 = vld [vmem:[#allocation2 + $0x50] sm:$0xff]
          %v2646 = vld [vmem:[#allocation2 + $0x58] sm:$0xff]
          %v2647 = vld [vmem:[#allocation2 + $0x60] sm:$0xff]
          %v2648 = vld [vmem:[#allocation2 + $0x68] sm:$0xff]
          %v2649 = vld [vmem:[#allocation2 + $0x70] sm:$0xff]
          %v2650 = vld [vmem:[#allocation2 + $0x78] sm:$0xff]
          %v2651 = vld [vmem:[#allocation2 + $0x80] sm:$0xff]
          %v2652 = vld [vmem:[#allocation2 + $0x88] sm:$0xff]
          %v2653 = vld [vmem:[#allocation2 + $0x90] sm:$0xff]
          %v2654 = vld [vmem:[#allocation2 + $0x98] sm:$0xff]
          %v2655 = vld [vmem:[#allocation2 + $0xa0] sm:$0xff]
          %v2656 = vld [vmem:[#allocation2 + $0xa8] sm:$0xff]
          %v2657 = vld [vmem:[#allocation2 + $0xb0] sm:$0xff]
          %v2658 = vld [vmem:[#allocation2 + $0xb8] sm:$0xff]
          %v2659 = vld [vmem:[#allocation2 + $0xc0] sm:$0xff]
          %v2660 = vld [vmem:[#allocation2 + $0xc8] sm:$0xff]
          %v2661 = vld [vmem:[#allocation2 + $0xd0] sm:$0xff]
          %v2662 = vld [vmem:[#allocation2 + $0xd8] sm:$0xff]
          %v2663 = vld [vmem:[#allocation2 + $0xe0] sm:$0xff]
          %v2664 = vld [vmem:[#allocation2 + $0xe8] sm:$0xff]
          %v2665 = vld [vmem:[#allocation2 + $0xf0] sm:$0xff]
          %v2666 = vld [vmem:[#allocation2 + $0xf8] sm:$0xff]
          %v2667 = vld [vmem:[#allocation2 + $0x100] sm:$0xff]
          %v2668 = vld [vmem:[#allocation2 + $0x108] sm:$0xff]
          %v2669 = vld [vmem:[#allocation2 + $0x110] sm:$0xff]
          %v2670 = vld [vmem:[#allocation2 + $0x118] sm:$0xff]
          %v2671 = vld [vmem:[#allocation2 + $0x120] sm:$0xff]
          %v2672 = vld [vmem:[#allocation2 + $0x128] sm:$0xff]
          %v2673 = vld [vmem:[#allocation2 + $0x130] sm:$0xff]
          %v2674 = vld [vmem:[#allocation2 + $0x138] sm:$0xff]
          %v2675 = vld [vmem:[#allocation2 + $0x140] sm:$0xff]
          %v2676 = vld [vmem:[#allocation2 + $0x148] sm:$0xff]
          %v2677 = vld [vmem:[#allocation2 + $0x150] sm:$0xff]
          %v2678 = vld [vmem:[#allocation2 + $0x158] sm:$0xff]
          %v2679 = vld [vmem:[#allocation2 + $0x160] sm:$0xff]
          %v2680 = vld [vmem:[#allocation2 + $0x168] sm:$0xff]
          %v2681 = vld [vmem:[#allocation2 + $0x170] sm:$0xff]
          %v2682 = vld [vmem:[#allocation2 + $0x178] sm:$0xff]
          %v2683 = vld [vmem:[#allocation2 + $0x180] sm:$0xff]
          %v2684 = vld [vmem:[#allocation2 + $0x188] sm:$0xff]
          %v2685 = vld [vmem:[#allocation2 + $0x190] sm:$0xff]
          %v2686 = vld [vmem:[#allocation2 + $0x198] sm:$0xff]
          %v2687 = vld [vmem:[#allocation2 + $0x1a0] sm:$0xff]
          %v2688 = vld [vmem:[#allocation2 + $0x1a8] sm:$0xff]
          %v2689 = vld [vmem:[#allocation2 + $0x1b0] sm:$0xff]
          %v2690 = vld [vmem:[#allocation2 + $0x1b8] sm:$0xff]
          %v2691 = vld [vmem:[#allocation2 + $0x1c0] sm:$0xff]
          %v2692 = vld [vmem:[#allocation2 + $0x1c8] sm:$0xff]
          %v2693 = vld [vmem:[#allocation2 + $0x1d0] sm:$0xff]
          %v2694 = vld [vmem:[#allocation2 + $0x1d8] sm:$0xff]
          %v2695 = vld [vmem:[#allocation2 + $0x1e0] sm:$0xff]
          %v2696 = vld [vmem:[#allocation2 + $0x1e8] sm:$0xff]
          %v2697 = vld [vmem:[#allocation2 + $0x1f0] sm:$0xff]
          %v2698 = vld [vmem:[#allocation2 + $0x1f8] sm:$0xff]
          %v2699 = vpack.c.bf16 %v2637, %v2635
          %v2700 = vpack.c.bf16 %v2638, %v2636
          %v2701 = vpack.c.bf16 %v2641, %v2639
          %v2702 = vpack.c.bf16 %v2642, %v2640
          %v2703 = vpack.c.bf16 %v2645, %v2643
          %v2704 = vpack.c.bf16 %v2646, %v2644
          %v2705 = vpack.c.bf16 %v2649, %v2647
          %v2706 = vpack.c.bf16 %v2650, %v2648
          %v2707 = vpack.c.bf16 %v2653, %v2651
          %v2708 = vpack.c.bf16 %v2654, %v2652
          %v2709 = vpack.c.bf16 %v2657, %v2655
          %v2710 = vpack.c.bf16 %v2658, %v2656
          %v2711 = vpack.c.bf16 %v2661, %v2659
          %v2712 = vpack.c.bf16 %v2662, %v2660
          %v2713 = vpack.c.bf16 %v2665, %v2663
          %v2714 = vpack.c.bf16 %v2666, %v2664
          %v2715 = vpack.c.bf16 %v2669, %v2667
          %v2716 = vpack.c.bf16 %v2670, %v2668
          %v2717 = vpack.c.bf16 %v2673, %v2671
          %v2718 = vpack.c.bf16 %v2674, %v2672
          %v2719 = vpack.c.bf16 %v2677, %v2675
          %v2720 = vpack.c.bf16 %v2678, %v2676
          %v2721 = vpack.c.bf16 %v2681, %v2679
          %v2722 = vpack.c.bf16 %v2682, %v2680
          %v2723 = vpack.c.bf16 %v2685, %v2683
          %v2724 = vpack.c.bf16 %v2686, %v2684
          %v2725 = vpack.c.bf16 %v2689, %v2687
          %v2726 = vpack.c.bf16 %v2690, %v2688
          %v2727 = vpack.c.bf16 %v2693, %v2691
          %v2728 = vpack.c.bf16 %v2694, %v2692
          %v2729 = vpack.c.bf16 %v2697, %v2695
          %v2730 = vpack.c.bf16 %v2698, %v2696
          %v2763 = vunpack.c.l.b16 %v2699
          %v2764 = vunpack.c.l.b16 %v2700
          %v2765 = vunpack.c.h.b16 %v2699
          %v2766 = vunpack.c.h.b16 %v2700
          %v2767 = vunpack.c.l.b16 %v2701
          %v2768 = vunpack.c.l.b16 %v2702
          %v2769 = vunpack.c.h.b16 %v2701
          %v2770 = vunpack.c.h.b16 %v2702
          %v2771 = vunpack.c.l.b16 %v2703
          %v2772 = vunpack.c.l.b16 %v2704
          %v2773 = vunpack.c.h.b16 %v2703
          %v2774 = vunpack.c.h.b16 %v2704
          %v2775 = vunpack.c.l.b16 %v2705
          %v2776 = vunpack.c.l.b16 %v2706
          %v2777 = vunpack.c.h.b16 %v2705
          %v2778 = vunpack.c.h.b16 %v2706
          %v2779 = vunpack.c.l.b16 %v2707
          %v2780 = vunpack.c.l.b16 %v2708
          %v2781 = vunpack.c.h.b16 %v2707
          %v2782 = vunpack.c.h.b16 %v2708
          %v2783 = vunpack.c.l.b16 %v2709
          %v2784 = vunpack.c.l.b16 %v2710
          %v2785 = vunpack.c.h.b16 %v2709
          %v2786 = vunpack.c.h.b16 %v2710
          %v2787 = vunpack.c.l.b16 %v2711
          %v2788 = vunpack.c.l.b16 %v2712
          %v2789 = vunpack.c.h.b16 %v2711
          %v2790 = vunpack.c.h.b16 %v2712
          %v2791 = vunpack.c.l.b16 %v2713
          %v2792 = vunpack.c.l.b16 %v2714
          %v2793 = vunpack.c.h.b16 %v2713
          %v2794 = vunpack.c.h.b16 %v2714
          %v2795 = vunpack.c.l.b16 %v2715
          %v2796 = vunpack.c.l.b16 %v2716
          %v2797 = vunpack.c.h.b16 %v2715
          %v2798 = vunpack.c.h.b16 %v2716
          %v2799 = vunpack.c.l.b16 %v2717
          %v2800 = vunpack.c.l.b16 %v2718
          %v2801 = vunpack.c.h.b16 %v2717
          %v2802 = vunpack.c.h.b16 %v2718
          %v2803 = vunpack.c.l.b16 %v2719
          %v2804 = vunpack.c.l.b16 %v2720
          %v2805 = vunpack.c.h.b16 %v2719
          %v2806 = vunpack.c.h.b16 %v2720
          %v2807 = vunpack.c.l.b16 %v2721
          %v2808 = vunpack.c.l.b16 %v2722
          %v2809 = vunpack.c.h.b16 %v2721
          %v2810 = vunpack.c.h.b16 %v2722
          %v2811 = vunpack.c.l.b16 %v2723
          %v2812 = vunpack.c.l.b16 %v2724
          %v2813 = vunpack.c.h.b16 %v2723
          %v2814 = vunpack.c.h.b16 %v2724
          %v2815 = vunpack.c.l.b16 %v2725
          %v2816 = vunpack.c.l.b16 %v2726
          %v2817 = vunpack.c.h.b16 %v2725
          %v2818 = vunpack.c.h.b16 %v2726
          %v2819 = vunpack.c.l.b16 %v2727
          %v2820 = vunpack.c.l.b16 %v2728
          %v2821 = vunpack.c.h.b16 %v2727
          %v2822 = vunpack.c.h.b16 %v2728
          %v2823 = vunpack.c.l.b16 %v2729
          %v2824 = vunpack.c.l.b16 %v2730
          %v2825 = vunpack.c.h.b16 %v2729
          %v2826 = vunpack.c.h.b16 %v2730
          %v2827 = vpack.c.b16 %v2764, %v2763
          %v2828 = vpack.c.b16 %v2766, %v2765
          %v2829 = vpack.c.b16 %v2768, %v2767
          %v2830 = vpack.c.b16 %v2770, %v2769
          %v2831 = vpack.c.b16 %v2772, %v2771
          %v2832 = vpack.c.b16 %v2774, %v2773
          %v2833 = vpack.c.b16 %v2776, %v2775
          %v2834 = vpack.c.b16 %v2778, %v2777
          %v2835 = vpack.c.b16 %v2780, %v2779
          %v2836 = vpack.c.b16 %v2782, %v2781
          %v2837 = vpack.c.b16 %v2784, %v2783
          %v2838 = vpack.c.b16 %v2786, %v2785
          %v2839 = vpack.c.b16 %v2788, %v2787
          %v2840 = vpack.c.b16 %v2790, %v2789
          %v2841 = vpack.c.b16 %v2792, %v2791
          %v2842 = vpack.c.b16 %v2794, %v2793
          %v2843 = vpack.c.b16 %v2796, %v2795
          %v2844 = vpack.c.b16 %v2798, %v2797
          %v2845 = vpack.c.b16 %v2800, %v2799
          %v2846 = vpack.c.b16 %v2802, %v2801
          %v2847 = vpack.c.b16 %v2804, %v2803
          %v2848 = vpack.c.b16 %v2806, %v2805
          %v2849 = vpack.c.b16 %v2808, %v2807
          %v2850 = vpack.c.b16 %v2810, %v2809
          %v2851 = vpack.c.b16 %v2812, %v2811
          %v2852 = vpack.c.b16 %v2814, %v2813
          %v2853 = vpack.c.b16 %v2816, %v2815
          %v2854 = vpack.c.b16 %v2818, %v2817
          %v2855 = vpack.c.b16 %v2820, %v2819
          %v2856 = vpack.c.b16 %v2822, %v2821
          %v2857 = vpack.c.b16 %v2824, %v2823
          %v2858 = vpack.c.b16 %v2826, %v2825
          %2891 = vst [vmem:[%s301] sm:$0xff] %v2827
          %2892 = vst [vmem:[%s301 + $0x8] sm:$0xff] %v2828
          %2893 = vst [vmem:[%s301 + $0x10] sm:$0xff] %v2829
          %2894 = vst [vmem:[%s301 + $0x18] sm:$0xff] %v2830
          %2895 = vst [vmem:[%s301 + $0x20] sm:$0xff] %v2831
          %2896 = vst [vmem:[%s301 + $0x28] sm:$0xff] %v2832
          %2897 = vst [vmem:[%s301 + $0x30] sm:$0xff] %v2833
          %2898 = vst [vmem:[%s301 + $0x38] sm:$0xff] %v2834
          %2899 = vst [vmem:[%s301 + $0x40] sm:$0xff] %v2835
          %2900 = vst [vmem:[%s301 + $0x48] sm:$0xff] %v2836
          %2901 = vst [vmem:[%s301 + $0x50] sm:$0xff] %v2837
          %2902 = vst [vmem:[%s301 + $0x58] sm:$0xff] %v2838
          %2903 = vst [vmem:[%s301 + $0x60] sm:$0xff] %v2839
          %2904 = vst [vmem:[%s301 + $0x68] sm:$0xff] %v2840
          %2905 = vst [vmem:[%s301 + $0x70] sm:$0xff] %v2841
          %2906 = vst [vmem:[%s301 + $0x78] sm:$0xff] %v2842
          %2907 = vst [vmem:[%s301 + $0x80] sm:$0xff] %v2843
          %2908 = vst [vmem:[%s301 + $0x88] sm:$0xff] %v2844
          %2909 = vst [vmem:[%s301 + $0x90] sm:$0xff] %v2845
          %2910 = vst [vmem:[%s301 + $0x98] sm:$0xff] %v2846
          %2911 = vst [vmem:[%s301 + $0xa0] sm:$0xff] %v2847
          %2912 = vst [vmem:[%s301 + $0xa8] sm:$0xff] %v2848
          %2913 = vst [vmem:[%s301 + $0xb0] sm:$0xff] %v2849
          %2914 = vst [vmem:[%s301 + $0xb8] sm:$0xff] %v2850
          %2915 = vst [vmem:[%s301 + $0xc0] sm:$0xff] %v2851
          %2916 = vst [vmem:[%s301 + $0xc8] sm:$0xff] %v2852
          %2917 = vst [vmem:[%s301 + $0xd0] sm:$0xff] %v2853
          %2918 = vst [vmem:[%s301 + $0xd8] sm:$0xff] %v2854
          %2919 = vst [vmem:[%s301 + $0xe0] sm:$0xff] %v2855
          %2920 = vst [vmem:[%s301 + $0xe8] sm:$0xff] %v2856
          %2921 = vst [vmem:[%s301 + $0xf0] sm:$0xff] %v2857
          %2922 = vst [vmem:[%s301 + $0xf8] sm:$0xff] %v2858
        $region60: #{tpu_custom_call.1} parent=31 // pred_fallthru
          _
        %s2923 = sand.u32 %s136, 1
        %s2924 = scalar_lea.sflag [#allocation5], %s2923
        %s2925 = sand.u32 %s136, 1
        %s2926 = smul.addr %s2925, 256
        %s2927 = scalar_lea.vmem [#allocation9], %s2926
        // Predicated region
        $region61: #{tpu_custom_call.1} parent=31 // pred_check
          %p2928 = pneg %p146
        $region62: #{tpu_custom_call.1} parent=31 // pred_check_branch
          %2930 = sbr.rel (%p2928) target = $region64
        $region63: #{tpu_custom_call.1} parent=31 // pred_region
          %s2931 = smul.u32 32, %s28
          %s2932 = smul.u32 2, %s29
          %s2934 = ssub.s32 4096, 4096
          %2935 = vsyncadd %s2924, %s2934
          %s2936 = smul.addr %s2931, 4
          %s2937 = sadd.s32 %s2932, %s2936
          %s2938 = smul.addr %s2937, 64
          %s2939 = scalar_lea.hbm %s3, %s2938
          %s2940 = sshll.u32 %s2927, 4
          %s2941 = int_to_ptr.vmem [resolvable:$true] %s2940
          %2946 = dma.vmem_to_hbm [thread:$0]  %s2941, 4096, %s2939, %s2924, 128, 256, 8
        $region64: #{tpu_custom_call.1} parent=31 // pred_fallthru
          _
      $region32: #{tpu_custom_call.1} parent=5 // pred_fallthru
        _
      %p2947 = scmp.le.s32.totalorder 2, %s18
      // Predicated region
      $region65: #{tpu_custom_call.1} parent=5 // pred_check
        %p2948 = pneg %p2947
      $region66: #{tpu_custom_call.1} parent=5 // pred_check_branch
        %2950 = sbr.rel (%p2948) target = $region68
      $region67: #{tpu_custom_call.1} parent=5 // pred_region
        %s2951 = ssub.s32 %s18, 2
        // Predicated region
        $region69: #{tpu_custom_call.1} parent=67 // pred_check
          %p2952 = pneg %p152
        $region70: #{tpu_custom_call.1} parent=67 // pred_check_branch
          %2954 = sbr.rel (%p2952) target = $region72
        $region71: #{tpu_custom_call.1} parent=67 // pred_region
          %s2955 = sand.u32 %s137, 1
          %s2956 = scalar_lea.sflag [#allocation5], %s2955
          %s2957 = sand.u32 %s137, 1
          %s2958 = smul.addr %s2957, 256
          %s2959 = scalar_lea.vmem [#allocation9], %s2958
          %2960 = dma.done %s2956, 4096
        $region72: #{tpu_custom_call.1} parent=67 // pred_fallthru
          _
      $region68: #{tpu_custom_call.1} parent=5 // pred_fallthru
        _
    $region6: #{tpu_custom_call.1} parent=1 // loop_footer
      %s22 = sadd.s32 1, %s18
    $region7: #{tpu_custom_call.1} parent=1 // loop_footer_branch
      %17 = sbr.rel target = $region3
    $region8: #{tpu_custom_call.1} parent=1 // loop_exit
      _
    %2961 = vsyncpa [#allocation4], 1
    %s2962 = scalar_lea.sflag [#allocation4], 1
    %2963 = vsyncpa %s2962, 1
    %2964 = vsyncpa [#allocation7], 1
    %s2965 = scalar_lea.sflag [#allocation7], 1
    %2966 = vsyncpa %s2965, 1
    %2967 = vsyncpa [#allocation5], 1
    %s2968 = scalar_lea.sflag [#allocation5], 1
    %2969 = vsyncpa %s2968, 1

</llo_original>
